<compile_context>
chip_gen: v7x
topology: tpu7x:2x2x1
jax: 0.10.0
libtpu: 0.0.40
codegen_flags: <defaults>
</compile_context>

<pallas_src>
import functools

import jax
import jax.numpy as jnp
from jax import lax
from jax.experimental import pallas as pl
from jax.experimental.pallas import tpu as pltpu


# ------------------------------ fused kernel --------------------------------

def _decoder_kernel(*refs, T, B, H, O, L, static_unroll):
    # refs = [x_flat, h0, w_ih0, (w_ih_rest if L>1), w_hh, bias,
    #         w_out, b_out, out_ref, seq_ref, a_ref]
    x_ref, h0_ref, w_ih0_ref = refs[0], refs[1], refs[2]
    if L > 1:
        w_ih_rest_ref = refs[3]
        base = 4
    else:
        w_ih_rest_ref = None
        base = 3
    w_hh_ref = refs[base]
    bias_ref = refs[base + 1]
    w_out_ref = refs[base + 2]
    b_out_ref = refs[base + 3]
    out_ref = refs[base + 4]
    seq_ref = refs[base + 5]      # (T*B, H)   f32
    a_ref = refs[base + 6]        # (T*B, 3H)  f32

    wdt = w_hh_ref.dtype
    cast_lhs = (wdt != jnp.float32)

    bias_all = bias_ref[...]                                  # (L, 1, 4H) f32

    for l in range(L):
        c_l = bias_all[l, :, :3 * H]                          # (1, 3H)
        bhn_l = bias_all[l, :, 3 * H:]                        # (1, H)

        # -------- parallel pre-pass: fused input projection, all T steps -----
        if l == 0:
            # D_in == 1: rank-1 outer product -> pure VPU broadcast multiply.
            a_ref[...] = x_ref[...] * w_ih0_ref[...] + c_l    # (T*B,1)*(1,3H)
        else:
            inp = seq_ref[...]                                # (T*B, H)
            if cast_lhs:
                inp = inp.astype(wdt)
            a_ref[...] = jnp.dot(inp, w_ih_rest_ref[l - 1],
                                 preferred_element_type=jnp.float32) + c_l

        # -------- serial recurrence: ONE fused (B,3H) dot per step -----------
        w_hh_l = w_hh_ref[l]                                  # (H, 3H)
        bhn_b = jnp.broadcast_to(bhn_l, (B, H))               # hoisted
        h = h0_ref[l]                                         # (B, H) f32

        def gru_step(t_off, h):
            gi = a_ref[pl.ds(t_off, B), :]                    # (B, 3H)
            lhs = h.astype(wdt) if cast_lhs else h
            gh = jnp.dot(lhs, w_hh_l, preferred_element_type=jnp.float32)
            r = jax.nn.sigmoid(gi[:, :H] + gh[:, :H])
            z = jax.nn.sigmoid(gi[:, H:2 * H] + gh[:, H:2 * H])
            n = jnp.tanh(gi[:, 2 * H:] + r * (gh[:, 2 * H:] + bhn_b))
            h_new = (1.0 - z) * n + z * h
            seq_ref[pl.ds(t_off, B), :] = h_new
            return h_new

        if static_unroll:
            for t in range(T):                                # small T: unroll
                h = gru_step(t * B, h)
        else:
            # Bounded-unroll loop keeps vreg pressure / code size in check.
            def body(t, h):
                return gru_step(pl.multiple_of(t * B, B), h)
            h = lax.fori_loop(0, T, body, h, unroll=8)

    # -------- fused output Linear, written once as a single slab -------------
    hseq = seq_ref[...]                                       # (T*B, H)
    if cast_lhs:
        hseq = hseq.astype(wdt)
    out_ref[...] = (jnp.dot(hseq, w_out_ref[...],
                            preferred_element_type=jnp.float32)
                    + b_out_ref[...])


# ------------------------------ wrapper --------------------------------------

def _fuse_gate_cols(w, H):
    """(3H, d_in) PyTorch gate-major weight -> (d_in, 3H) with [r|z|n] lanes."""
    w3 = w.reshape(3, H, -1)
    return jnp.concatenate([w3[0].T, w3[1].T, w3[2].T], axis=1)


def _padded_bytes(shape, itemsize):
    s = list(shape)
    if len(s) >= 1:
        s[-1] = -(-s[-1] // 128) * 128
    if len(s) >= 2:
        s[-2] = -(-s[-2] // 8) * 8
    n = 1
    for d in s:
        n *= d
    return n * itemsize


def decoder_rnn_forward(x, hn, params, *, param_dtype=jnp.float32):
    """Equivalent of Decoder_RNN.forward: out = Linear(GRU(x, hn)[0]).

    param_dtype=jnp.bfloat16 casts BOTH matmul operands (weights and the
    activation LHS at the dot call sites) to bf16 so the v6e/v7x MXU runs at
    native bf16 rate at larger H; all elementwise/gate math stays f32.
    Default f32 for bit-tight checks (and for v5e, which has no bf16 VPU/EUP).
    """
    T, B, D_in = x.shape
    L = len(params["gru"])
    H = hn.shape[-1]
    w_out, b_out = params["out"]
    O = w_out.shape[0]

    # ---- host-side packing into a few lane-dense slabs ----------------------
    x_flat = x.reshape(T * B, D_in).astype(jnp.float32)

    w_ih0 = None
    w_ih_rest = []
    w_hh_all = []
    bias_all = []
    for layer, (w_ih, w_hh, b_ih, b_hh) in enumerate(params["gru"]):
        w_ih_f = _fuse_gate_cols(w_ih, H).astype(param_dtype)   # (d_in, 3H)
        w_hh_f = _fuse_gate_cols(w_hh, H).astype(param_dtype)   # (H, 3H)
        if layer == 0:
            w_ih0 = w_ih_f                                       # (1, 3H)
        else:
            w_ih_rest.append(w_ih_f)
        w_hh_all.append(w_hh_f)
        # Fold b_ih (all gates) + b_hh (r, z gates) into the pre-pass constant;
        # keep b_hh_n separate (added inside tanh, multiplied by r).
        c = jnp.concatenate([b_ih[:H] + b_hh[:H],
                             b_ih[H:2 * H] + b_hh[H:2 * H],
                             b_ih[2 * H:]]).astype(jnp.float32)  # (3H,)
        bias_all.append(jnp.concatenate([c, b_hh[2 * H:].astype(jnp.float32)]))

    w_hh_slab = jnp.stack(w_hh_all, axis=0)                      # (L, H, 3H)
    bias_slab = jnp.stack(bias_all, axis=0).reshape(L, 1, 4 * H) # (L, 1, 4H)
    w_out_t = jnp.transpose(w_out).astype(param_dtype)           # (H, O)
    b_out_2d = b_out.reshape(1, O).astype(jnp.float32)

    inputs = [x_flat, hn.astype(jnp.float32), w_ih0]
    in_specs = [
        pl.BlockSpec((T * B, D_in), lambda i: (0, 0)),
        pl.BlockSpec((L, B, H), lambda i: (0, 0, 0)),
        pl.BlockSpec((1, 3 * H), lambda i: (0, 0)),
    ]
    if L > 1:
        w_ih_rest_slab = jnp.stack(w_ih_rest, axis=0)            # (L-1, H, 3H)
        inputs.append(w_ih_rest_slab)
        in_specs.append(pl.BlockSpec((L - 1, H, 3 * H), lambda i: (0, 0, 0)))
    inputs += [w_hh_slab, bias_slab, w_out_t, b_out_2d]
    in_specs += [
        pl.BlockSpec((L, H, 3 * H), lambda i: (0, 0, 0)),
        pl.BlockSpec((L, 1, 4 * H), lambda i: (0, 0, 0)),
        pl.BlockSpec((H, O), lambda i: (0, 0)),
        pl.BlockSpec((1, O), lambda i: (0, 0)),
    ]

    scratch_shapes = [
        pltpu.VMEM((T * B, H), jnp.float32),                     # layer I/O seq
        pltpu.VMEM((T * B, 3 * H), jnp.float32),                 # hoisted input proj.
    ]

    # Explicit VMEM budget (inputs double-buffered + output + scratch), clamped
    # so the same config never exceeds v7x's 64 MiB physical VMEM.
    est = sum(2 * _padded_bytes(a.shape, a.dtype.itemsize) for a in inputs)
    est += 2 * _padded_bytes((T * B, O), 4)
    est += _padded_bytes((T * B, H), 4) + _padded_bytes((T * B, 3 * H), 4)
    vmem_limit = int(min(max(est + (2 << 20), 8 << 20), 64 << 20))

    kernel = functools.partial(_decoder_kernel, T=T, B=B, H=H, O=O, L=L,
                               static_unroll=(T <= 32))
    out = pl.pallas_call(
        kernel,
        out_shape=jax.ShapeDtypeStruct((T * B, O), jnp.float32),
        grid_spec=pltpu.PrefetchScalarGridSpec(
            num_scalar_prefetch=0,
            grid=(1,),                                           # single invocation
            in_specs=in_specs,
            out_specs=pl.BlockSpec((T * B, O), lambda i: (0, 0)),
            scratch_shapes=scratch_shapes,
        ),
        compiler_params=pltpu.CompilerParams(
            dimension_semantics=("arbitrary",),
            vmem_limit_bytes=vmem_limit),
    )(*inputs)
    return out.reshape(T, B, O)


# ------------------------------ param init ----------------------------------

def init_decoder_params(key, hidden_size, output_size, num_layers, input_size=1):
    """PyTorch-shaped params, U(-1/sqrt(H), 1/sqrt(H)) init."""
    params = {"gru": [], "out": None}
    bound = 1.0 / jnp.sqrt(jnp.float32(hidden_size))
    for layer in range(num_layers):
        d_in = input_size if layer == 0 else hidden_size
        key, k1, k2, k3, k4 = jax.random.split(key, 5)
        w_ih = jax.random.uniform(k1, (3 * hidden_size, d_in),
                                  minval=-bound, maxval=bound, dtype=jnp.float32)
        w_hh = jax.random.uniform(k2, (3 * hidden_size, hidden_size),
                                  minval=-bound, maxval=bound, dtype=jnp.float32)
        b_ih = jax.random.uniform(k3, (3 * hidden_size,),
                                  minval=-bound, maxval=bound, dtype=jnp.float32)
        b_hh = jax.random.uniform(k4, (3 * hidden_size,),
                                  minval=-bound, maxval=bound, dtype=jnp.float32)
        params["gru"].append((w_ih, w_hh, b_ih, b_hh))
    key, k5, k6 = jax.random.split(key, 3)
    w_out = jax.random.uniform(k5, (output_size, hidden_size),
                               minval=-bound, maxval=bound, dtype=jnp.float32)
    b_out = jax.random.uniform(k6, (output_size,),
                               minval=-bound, maxval=bound, dtype=jnp.float32)
    params["out"] = (w_out, b_out)
    return params


# --------------------------- pure-JAX reference ------------------------------

def decoder_rnn_reference(x, hn, params):
    inp = x
    for layer, (w_ih, w_hh, b_ih, b_hh) in enumerate(params["gru"]):
        H = w_hh.shape[1]

        def step(h_prev, x_t, w_ih=w_ih, w_hh=w_hh, b_ih=b_ih, b_hh=b_hh, H=H):
            gi = x_t @ w_ih.T + b_ih
            gh = h_prev @ w_hh.T + b_hh
            r = jax.nn.sigmoid(gi[:, :H] + gh[:, :H])
            z = jax.nn.sigmoid(gi[:, H:2 * H] + gh[:, H:2 * H])
            n = jnp.tanh(gi[:, 2 * H:] + r * gh[:, 2 * H:])
            h_new = (1.0 - z) * n + z * h_prev
            return h_new, h_new

        _, outs = lax.scan(step, hn[layer], inp)
        inp = outs
    w_out, b_out = params["out"]
    return inp @ w_out.T + b_out


# ---------------------------------- main -------------------------------------

if __name__ == "__main__":
    SEQ, BATCH = 8, 2
    HIDDEN, OUTPUT, NUM_LAYERS, INPUT_SIZE = 32, 8, 2, 1

    key = jax.random.PRNGKey(0)
    kx, kh, kp = jax.random.split(key, 3)

    x = jax.random.normal(kx, (SEQ, BATCH, INPUT_SIZE), dtype=jnp.float32)
    hn = jax.random.normal(kh, (NUM_LAYERS, BATCH, HIDDEN), dtype=jnp.float32)
    params = init_decoder_params(kp, HIDDEN, OUTPUT, NUM_LAYERS, INPUT_SIZE)

    out = decoder_rnn_forward(x, hn, params)
    out = jax.block_until_ready(out)

    ref = decoder_rnn_reference(x, hn, params)
    assert out.shape == (SEQ, BATCH, OUTPUT), out.shape
    assert jnp.allclose(out, ref, rtol=1e-3, atol=5e-3), "mismatch vs reference"

    print("KERNEL_OK")
</pallas_src>

<mosaic_0001>
module attributes {stable_mosaic.version = 11 : i64} {
  func.func @_decoder_kernel(%arg0: i32, %arg1: memref<16x1xf32, #tpu.memory_space<vmem>>, %arg2: memref<2x2x32xf32, #tpu.memory_space<vmem>>, %arg3: memref<1x96xf32, #tpu.memory_space<vmem>>, %arg4: memref<1x32x96xf32, #tpu.memory_space<vmem>>, %arg5: memref<2x32x96xf32, #tpu.memory_space<vmem>>, %arg6: memref<2x1x128xf32, #tpu.memory_space<vmem>>, %arg7: memref<32x8xf32, #tpu.memory_space<vmem>>, %arg8: memref<1x8xf32, #tpu.memory_space<vmem>>, %arg9: memref<16x8xf32, #tpu.memory_space<vmem>>, %arg10: memref<16x32xf32, #tpu.memory_space<vmem>>, %arg11: memref<16x96xf32, #tpu.memory_space<vmem>>) attributes {dimension_semantics = [#tpu.dimension_semantics<arbitrary>], iteration_bounds = array<i64: 1>, scalar_prefetch = 0 : i64, scratch_operands = 2 : i64, tpu.core_type = #tpu.core_type<tc>, window_params = [{pipeline_mode = #tpu.pipeline_mode<synchronous>, transform_indices = @transform_0, window_bounds = array<i64: 16, 1>}, {pipeline_mode = #tpu.pipeline_mode<synchronous>, transform_indices = @transform_1, window_bounds = array<i64: 2, 2, 32>}, {pipeline_mode = #tpu.pipeline_mode<synchronous>, transform_indices = @transform_2, window_bounds = array<i64: 1, 96>}, {pipeline_mode = #tpu.pipeline_mode<synchronous>, transform_indices = @transform_3, window_bounds = array<i64: 1, 32, 96>}, {pipeline_mode = #tpu.pipeline_mode<synchronous>, transform_indices = @transform_4, window_bounds = array<i64: 2, 32, 96>}, {pipeline_mode = #tpu.pipeline_mode<synchronous>, transform_indices = @transform_5, window_bounds = array<i64: 2, 1, 128>}, {pipeline_mode = #tpu.pipeline_mode<synchronous>, transform_indices = @transform_6, window_bounds = array<i64: 32, 8>}, {pipeline_mode = #tpu.pipeline_mode<synchronous>, transform_indices = @transform_7, window_bounds = array<i64: 1, 8>}, {pipeline_mode = #tpu.pipeline_mode<synchronous>, transform_indices = @transform_8, window_bounds = array<i64: 16, 8>}]} {
    %c0 = arith.constant 0 : index
    %c0_0 = arith.constant 0 : index
    %c0_1 = arith.constant 0 : index
    %0 = vector.load %arg6[%c0, %c0_0, %c0_1] : memref<2x1x128xf32, #tpu.memory_space<vmem>>, vector<2x1x128xf32>
    %1 = vector.extract_strided_slice %0 {offsets = [0, 0, 0], sizes = [1, 1, 96], strides = [1, 1, 1]} : vector<2x1x128xf32> to vector<1x1x96xf32>
    %2 = vector.shape_cast %1 : vector<1x1x96xf32> to vector<1x96xf32>
    %3 = vector.extract_strided_slice %0 {offsets = [0, 0, 96], sizes = [1, 1, 32], strides = [1, 1, 1]} : vector<2x1x128xf32> to vector<1x1x32xf32>
    %4 = vector.shape_cast %3 : vector<1x1x32xf32> to vector<1x32xf32>
    %c0_2 = arith.constant 0 : index
    %c0_3 = arith.constant 0 : index
    %5 = vector.load %arg1[%c0_2, %c0_3] : memref<16x1xf32, #tpu.memory_space<vmem>>, vector<16x1xf32>
    %c0_4 = arith.constant 0 : index
    %c0_5 = arith.constant 0 : index
    %6 = vector.load %arg3[%c0_4, %c0_5] : memref<1x96xf32, #tpu.memory_space<vmem>>, vector<1x96xf32>
    %7 = vector.broadcast %5 : vector<16x1xf32> to vector<16x96xf32>
    %8 = vector.broadcast %6 : vector<1x96xf32> to vector<16x96xf32>
    %9 = arith.mulf %7, %8 : vector<16x96xf32>
    %10 = vector.broadcast %2 : vector<1x96xf32> to vector<16x96xf32>
    %11 = arith.addf %9, %10 : vector<16x96xf32>
    %c0_6 = arith.constant 0 : index
    %c0_7 = arith.constant 0 : index
    %12 = vector.load %arg11[%c0_6, %c0_7] : memref<16x96xf32, #tpu.memory_space<vmem>>, vector<16x96xf32>
    tpu.vector_store %arg11[%c0_6, %c0_7], %11 {strides = array<i32>} : memref<16x96xf32, #tpu.memory_space<vmem>>, vector<16x96xf32>,
    %c0_8 = arith.constant 0 : index
    %c0_9 = arith.constant 0 : index
    %c0_10 = arith.constant 0 : index
    %13 = vector.load %arg5[%c0_8, %c0_9, %c0_10] : memref<2x32x96xf32, #tpu.memory_space<vmem>>, vector<1x32x96xf32>
    %14 = vector.shape_cast %13 : vector<1x32x96xf32> to vector<32x96xf32>
    %15 = vector.shape_cast %4 : vector<1x32xf32> to vector<1x32xf32>
    %16 = vector.broadcast %15 : vector<1x32xf32> to vector<2x32xf32>
    %c0_11 = arith.constant 0 : index
    %c0_12 = arith.constant 0 : index
    %c0_13 = arith.constant 0 : index
    %17 = vector.load %arg2[%c0_11, %c0_12, %c0_13] : memref<2x2x32xf32, #tpu.memory_space<vmem>>, vector<1x2x32xf32>
    %18 = vector.shape_cast %17 : vector<1x2x32xf32> to vector<2x32xf32>
    %c0_14 = arith.constant 0 : index
    %c0_15 = arith.constant 0 : index
    %19 = vector.load %arg11[%c0_14, %c0_15] : memref<16x96xf32, #tpu.memory_space<vmem>>, vector<2x96xf32>
    %cst = arith.constant dense<0.000000e+00> : vector<2x96xf32>
    %20 = tpu.matmul %18, %14, %cst {dimension_numbers = #tpu.dot_dimension_numbers<[1], [0], [0], [1], [0, 0, 1, 1], [], []>} : vector<2x32xf32>, vector<32x96xf32>, vector<2x96xf32> -> vector<2x96xf32>
    %21 = vector.extract_strided_slice %19 {offsets = [0, 0], sizes = [2, 32], strides = [1, 1]} : vector<2x96xf32> to vector<2x32xf32>
    %22 = vector.extract_strided_slice %20 {offsets = [0, 0], sizes = [2, 32], strides = [1, 1]} : vector<2x96xf32> to vector<2x32xf32>
    %23 = arith.addf %21, %22 : vector<2x32xf32>
    %24 = arith.negf %23 : vector<2x32xf32>
    %25 = math.exp %24 : vector<2x32xf32>
    %cst_16 = arith.constant 1.000000e+00 : f32
    %26 = vector.broadcast %cst_16 : f32 to vector<2x32xf32>
    %27 = arith.addf %26, %25 : vector<2x32xf32>
    %28 = arith.divf %26, %27 : vector<2x32xf32>
    %29 = vector.extract_strided_slice %19 {offsets = [0, 32], sizes = [2, 32], strides = [1, 1]} : vector<2x96xf32> to vector<2x32xf32>
    %30 = vector.extract_strided_slice %20 {offsets = [0, 32], sizes = [2, 32], strides = [1, 1]} : vector<2x96xf32> to vector<2x32xf32>
    %31 = arith.addf %29, %30 : vector<2x32xf32>
    %32 = arith.negf %31 : vector<2x32xf32>
    %33 = math.exp %32 : vector<2x32xf32>
    %cst_17 = arith.constant 1.000000e+00 : f32
    %34 = vector.broadcast %cst_17 : f32 to vector<2x32xf32>
    %35 = arith.addf %34, %33 : vector<2x32xf32>
    %36 = arith.divf %34, %35 : vector<2x32xf32>
    %37 = vector.extract_strided_slice %19 {offsets = [0, 64], sizes = [2, 32], strides = [1, 1]} : vector<2x96xf32> to vector<2x32xf32>
    %38 = vector.extract_strided_slice %20 {offsets = [0, 64], sizes = [2, 32], strides = [1, 1]} : vector<2x96xf32> to vector<2x32xf32>
    %39 = arith.addf %38, %16 : vector<2x32xf32>
    %40 = arith.mulf %28, %39 : vector<2x32xf32>
    %41 = arith.addf %37, %40 : vector<2x32xf32>
    %42 = math.tanh %41 : vector<2x32xf32>
    %cst_18 = arith.constant 1.000000e+00 : f32
    %43 = vector.broadcast %cst_18 : f32 to vector<2x32xf32>
    %44 = arith.subf %43, %36 : vector<2x32xf32>
    %45 = arith.mulf %44, %42 : vector<2x32xf32>
    %46 = arith.mulf %36, %18 : vector<2x32xf32>
    %47 = arith.addf %45, %46 : vector<2x32xf32>
    %c0_19 = arith.constant 0 : index
    %c0_20 = arith.constant 0 : index
    %48 = vector.load %arg10[%c0_19, %c0_20] : memref<16x32xf32, #tpu.memory_space<vmem>>, vector<2x32xf32>
    tpu.vector_store %arg10[%c0_19, %c0_20], %47 {strides = array<i32>} : memref<16x32xf32, #tpu.memory_space<vmem>>, vector<2x32xf32>,
    %c2 = arith.constant 2 : index
    %c0_21 = arith.constant 0 : index
    %49 = vector.load %arg11[%c2, %c0_21] : memref<16x96xf32, #tpu.memory_space<vmem>>, vector<2x96xf32>
    %cst_22 = arith.constant dense<0.000000e+00> : vector<2x96xf32>
    %50 = tpu.matmul %47, %14, %cst_22 {dimension_numbers = #tpu.dot_dimension_numbers<[1], [0], [0], [1], [0, 0, 1, 1], [], []>} : vector<2x32xf32>, vector<32x96xf32>, vector<2x96xf32> -> vector<2x96xf32>
    %51 = vector.extract_strided_slice %49 {offsets = [0, 0], sizes = [2, 32], strides = [1, 1]} : vector<2x96xf32> to vector<2x32xf32>
    %52 = vector.extract_strided_slice %50 {offsets = [0, 0], sizes = [2, 32], strides = [1, 1]} : vector<2x96xf32> to vector<2x32xf32>
    %53 = arith.addf %51, %52 : vector<2x32xf32>
    %54 = arith.negf %53 : vector<2x32xf32>
    %55 = math.exp %54 : vector<2x32xf32>
    %cst_23 = arith.constant 1.000000e+00 : f32
    %56 = vector.broadcast %cst_23 : f32 to vector<2x32xf32>
    %57 = arith.addf %56, %55 : vector<2x32xf32>
    %58 = arith.divf %56, %57 : vector<2x32xf32>
    %59 = vector.extract_strided_slice %49 {offsets = [0, 32], sizes = [2, 32], strides = [1, 1]} : vector<2x96xf32> to vector<2x32xf32>
    %60 = vector.extract_strided_slice %50 {offsets = [0, 32], sizes = [2, 32], strides = [1, 1]} : vector<2x96xf32> to vector<2x32xf32>
    %61 = arith.addf %59, %60 : vector<2x32xf32>
    %62 = arith.negf %61 : vector<2x32xf32>
    %63 = math.exp %62 : vector<2x32xf32>
    %cst_24 = arith.constant 1.000000e+00 : f32
    %64 = vector.broadcast %cst_24 : f32 to vector<2x32xf32>
    %65 = arith.addf %64, %63 : vector<2x32xf32>
    %66 = arith.divf %64, %65 : vector<2x32xf32>
    %67 = vector.extract_strided_slice %49 {offsets = [0, 64], sizes = [2, 32], strides = [1, 1]} : vector<2x96xf32> to vector<2x32xf32>
    %68 = vector.extract_strided_slice %50 {offsets = [0, 64], sizes = [2, 32], strides = [1, 1]} : vector<2x96xf32> to vector<2x32xf32>
    %69 = arith.addf %68, %16 : vector<2x32xf32>
    %70 = arith.mulf %58, %69 : vector<2x32xf32>
    %71 = arith.addf %67, %70 : vector<2x32xf32>
    %72 = math.tanh %71 : vector<2x32xf32>
    %cst_25 = arith.constant 1.000000e+00 : f32
    %73 = vector.broadcast %cst_25 : f32 to vector<2x32xf32>
    %74 = arith.subf %73, %66 : vector<2x32xf32>
    %75 = arith.mulf %74, %72 : vector<2x32xf32>
    %76 = arith.mulf %66, %47 : vector<2x32xf32>
    %77 = arith.addf %75, %76 : vector<2x32xf32>
    %c2_26 = arith.constant 2 : index
    %c0_27 = arith.constant 0 : index
    %78 = vector.load %arg10[%c2_26, %c0_27] : memref<16x32xf32, #tpu.memory_space<vmem>>, vector<2x32xf32>
    tpu.vector_store %arg10[%c2_26, %c0_27], %77 {strides = array<i32>} : memref<16x32xf32, #tpu.memory_space<vmem>>, vector<2x32xf32>,
    %c4 = arith.constant 4 : index
    %c0_28 = arith.constant 0 : index
    %79 = vector.load %arg11[%c4, %c0_28] : memref<16x96xf32, #tpu.memory_space<vmem>>, vector<2x96xf32>
    %cst_29 = arith.constant dense<0.000000e+00> : vector<2x96xf32>
    %80 = tpu.matmul %77, %14, %cst_29 {dimension_numbers = #tpu.dot_dimension_numbers<[1], [0], [0], [1], [0, 0, 1, 1], [], []>} : vector<2x32xf32>, vector<32x96xf32>, vector<2x96xf32> -> vector<2x96xf32>
    %81 = vector.extract_strided_slice %79 {offsets = [0, 0], sizes = [2, 32], strides = [1, 1]} : vector<2x96xf32> to vector<2x32xf32>
    %82 = vector.extract_strided_slice %80 {offsets = [0, 0], sizes = [2, 32], strides = [1, 1]} : vector<2x96xf32> to vector<2x32xf32>
    %83 = arith.addf %81, %82 : vector<2x32xf32>
    %84 = arith.negf %83 : vector<2x32xf32>
    %85 = math.exp %84 : vector<2x32xf32>
    %cst_30 = arith.constant 1.000000e+00 : f32
    %86 = vector.broadcast %cst_30 : f32 to vector<2x32xf32>
    %87 = arith.addf %86, %85 : vector<2x32xf32>
    %88 = arith.divf %86, %87 : vector<2x32xf32>
    %89 = vector.extract_strided_slice %79 {offsets = [0, 32], sizes = [2, 32], strides = [1, 1]} : vector<2x96xf32> to vector<2x32xf32>
    %90 = vector.extract_strided_slice %80 {offsets = [0, 32], sizes = [2, 32], strides = [1, 1]} : vector<2x96xf32> to vector<2x32xf32>
    %91 = arith.addf %89, %90 : vector<2x32xf32>
    %92 = arith.negf %91 : vector<2x32xf32>
    %93 = math.exp %92 : vector<2x32xf32>
    %cst_31 = arith.constant 1.000000e+00 : f32
    %94 = vector.broadcast %cst_31 : f32 to vector<2x32xf32>
    %95 = arith.addf %94, %93 : vector<2x32xf32>
    %96 = arith.divf %94, %95 : vector<2x32xf32>
    %97 = vector.extract_strided_slice %79 {offsets = [0, 64], sizes = [2, 32], strides = [1, 1]} : vector<2x96xf32> to vector<2x32xf32>
    %98 = vector.extract_strided_slice %80 {offsets = [0, 64], sizes = [2, 32], strides = [1, 1]} : vector<2x96xf32> to vector<2x32xf32>
    %99 = arith.addf %98, %16 : vector<2x32xf32>
    %100 = arith.mulf %88, %99 : vector<2x32xf32>
    %101 = arith.addf %97, %100 : vector<2x32xf32>
    %102 = math.tanh %101 : vector<2x32xf32>
    %cst_32 = arith.constant 1.000000e+00 : f32
    %103 = vector.broadcast %cst_32 : f32 to vector<2x32xf32>
    %104 = arith.subf %103, %96 : vector<2x32xf32>
    %105 = arith.mulf %104, %102 : vector<2x32xf32>
    %106 = arith.mulf %96, %77 : vector<2x32xf32>
    %107 = arith.addf %105, %106 : vector<2x32xf32>
    %c4_33 = arith.constant 4 : index
    %c0_34 = arith.constant 0 : index
    %108 = vector.load %arg10[%c4_33, %c0_34] : memref<16x32xf32, #tpu.memory_space<vmem>>, vector<2x32xf32>
    tpu.vector_store %arg10[%c4_33, %c0_34], %107 {strides = array<i32>} : memref<16x32xf32, #tpu.memory_space<vmem>>, vector<2x32xf32>,
    %c6 = arith.constant 6 : index
    %c0_35 = arith.constant 0 : index
    %109 = vector.load %arg11[%c6, %c0_35] : memref<16x96xf32, #tpu.memory_space<vmem>>, vector<2x96xf32>
    %cst_36 = arith.constant dense<0.000000e+00> : vector<2x96xf32>
    %110 = tpu.matmul %107, %14, %cst_36 {dimension_numbers = #tpu.dot_dimension_numbers<[1], [0], [0], [1], [0, 0, 1, 1], [], []>} : vector<2x32xf32>, vector<32x96xf32>, vector<2x96xf32> -> vector<2x96xf32>
    %111 = vector.extract_strided_slice %109 {offsets = [0, 0], sizes = [2, 32], strides = [1, 1]} : vector<2x96xf32> to vector<2x32xf32>
    %112 = vector.extract_strided_slice %110 {offsets = [0, 0], sizes = [2, 32], strides = [1, 1]} : vector<2x96xf32> to vector<2x32xf32>
    %113 = arith.addf %111, %112 : vector<2x32xf32>
    %114 = arith.negf %113 : vector<2x32xf32>
    %115 = math.exp %114 : vector<2x32xf32>
    %cst_37 = arith.constant 1.000000e+00 : f32
    %116 = vector.broadcast %cst_37 : f32 to vector<2x32xf32>
    %117 = arith.addf %116, %115 : vector<2x32xf32>
    %118 = arith.divf %116, %117 : vector<2x32xf32>
    %119 = vector.extract_strided_slice %109 {offsets = [0, 32], sizes = [2, 32], strides = [1, 1]} : vector<2x96xf32> to vector<2x32xf32>
    %120 = vector.extract_strided_slice %110 {offsets = [0, 32], sizes = [2, 32], strides = [1, 1]} : vector<2x96xf32> to vector<2x32xf32>
    %121 = arith.addf %119, %120 : vector<2x32xf32>
    %122 = arith.negf %121 : vector<2x32xf32>
    %123 = math.exp %122 : vector<2x32xf32>
    %cst_38 = arith.constant 1.000000e+00 : f32
    %124 = vector.broadcast %cst_38 : f32 to vector<2x32xf32>
    %125 = arith.addf %124, %123 : vector<2x32xf32>
    %126 = arith.divf %124, %125 : vector<2x32xf32>
    %127 = vector.extract_strided_slice %109 {offsets = [0, 64], sizes = [2, 32], strides = [1, 1]} : vector<2x96xf32> to vector<2x32xf32>
    %128 = vector.extract_strided_slice %110 {offsets = [0, 64], sizes = [2, 32], strides = [1, 1]} : vector<2x96xf32> to vector<2x32xf32>
    %129 = arith.addf %128, %16 : vector<2x32xf32>
    %130 = arith.mulf %118, %129 : vector<2x32xf32>
    %131 = arith.addf %127, %130 : vector<2x32xf32>
    %132 = math.tanh %131 : vector<2x32xf32>
    %cst_39 = arith.constant 1.000000e+00 : f32
    %133 = vector.broadcast %cst_39 : f32 to vector<2x32xf32>
    %134 = arith.subf %133, %126 : vector<2x32xf32>
    %135 = arith.mulf %134, %132 : vector<2x32xf32>
    %136 = arith.mulf %126, %107 : vector<2x32xf32>
    %137 = arith.addf %135, %136 : vector<2x32xf32>
    %c6_40 = arith.constant 6 : index
    %c0_41 = arith.constant 0 : index
    %138 = vector.load %arg10[%c6_40, %c0_41] : memref<16x32xf32, #tpu.memory_space<vmem>>, vector<2x32xf32>
    tpu.vector_store %arg10[%c6_40, %c0_41], %137 {strides = array<i32>} : memref<16x32xf32, #tpu.memory_space<vmem>>, vector<2x32xf32>,
    %c8 = arith.constant 8 : index
    %c0_42 = arith.constant 0 : index
    %139 = vector.load %arg11[%c8, %c0_42] : memref<16x96xf32, #tpu.memory_space<vmem>>, vector<2x96xf32>
    %cst_43 = arith.constant dense<0.000000e+00> : vector<2x96xf32>
    %140 = tpu.matmul %137, %14, %cst_43 {dimension_numbers = #tpu.dot_dimension_numbers<[1], [0], [0], [1], [0, 0, 1, 1], [], []>} : vector<2x32xf32>, vector<32x96xf32>, vector<2x96xf32> -> vector<2x96xf32>
    %141 = vector.extract_strided_slice %139 {offsets = [0, 0], sizes = [2, 32], strides = [1, 1]} : vector<2x96xf32> to vector<2x32xf32>
    %142 = vector.extract_strided_slice %140 {offsets = [0, 0], sizes = [2, 32], strides = [1, 1]} : vector<2x96xf32> to vector<2x32xf32>
    %143 = arith.addf %141, %142 : vector<2x32xf32>
    %144 = arith.negf %143 : vector<2x32xf32>
    %145 = math.exp %144 : vector<2x32xf32>
    %cst_44 = arith.constant 1.000000e+00 : f32
    %146 = vector.broadcast %cst_44 : f32 to vector<2x32xf32>
    %147 = arith.addf %146, %145 : vector<2x32xf32>
    %148 = arith.divf %146, %147 : vector<2x32xf32>
    %149 = vector.extract_strided_slice %139 {offsets = [0, 32], sizes = [2, 32], strides = [1, 1]} : vector<2x96xf32> to vector<2x32xf32>
    %150 = vector.extract_strided_slice %140 {offsets = [0, 32], sizes = [2, 32], strides = [1, 1]} : vector<2x96xf32> to vector<2x32xf32>
    %151 = arith.addf %149, %150 : vector<2x32xf32>
    %152 = arith.negf %151 : vector<2x32xf32>
    %153 = math.exp %152 : vector<2x32xf32>
    %cst_45 = arith.constant 1.000000e+00 : f32
    %154 = vector.broadcast %cst_45 : f32 to vector<2x32xf32>
    %155 = arith.addf %154, %153 : vector<2x32xf32>
    %156 = arith.divf %154, %155 : vector<2x32xf32>
    %157 = vector.extract_strided_slice %139 {offsets = [0, 64], sizes = [2, 32], strides = [1, 1]} : vector<2x96xf32> to vector<2x32xf32>
    %158 = vector.extract_strided_slice %140 {offsets = [0, 64], sizes = [2, 32], strides = [1, 1]} : vector<2x96xf32> to vector<2x32xf32>
    %159 = arith.addf %158, %16 : vector<2x32xf32>
    %160 = arith.mulf %148, %159 : vector<2x32xf32>
    %161 = arith.addf %157, %160 : vector<2x32xf32>
    %162 = math.tanh %161 : vector<2x32xf32>
    %cst_46 = arith.constant 1.000000e+00 : f32
    %163 = vector.broadcast %cst_46 : f32 to vector<2x32xf32>
    %164 = arith.subf %163, %156 : vector<2x32xf32>
    %165 = arith.mulf %164, %162 : vector<2x32xf32>
    %166 = arith.mulf %156, %137 : vector<2x32xf32>
    %167 = arith.addf %165, %166 : vector<2x32xf32>
    %c8_47 = arith.constant 8 : index
    %c0_48 = arith.constant 0 : index
    %168 = vector.load %arg10[%c8_47, %c0_48] : memref<16x32xf32, #tpu.memory_space<vmem>>, vector<2x32xf32>
    tpu.vector_store %arg10[%c8_47, %c0_48], %167 {strides = array<i32>} : memref<16x32xf32, #tpu.memory_space<vmem>>, vector<2x32xf32>,
    %c10 = arith.constant 10 : index
    %c0_49 = arith.constant 0 : index
    %169 = vector.load %arg11[%c10, %c0_49] : memref<16x96xf32, #tpu.memory_space<vmem>>, vector<2x96xf32>
    %cst_50 = arith.constant dense<0.000000e+00> : vector<2x96xf32>
    %170 = tpu.matmul %167, %14, %cst_50 {dimension_numbers = #tpu.dot_dimension_numbers<[1], [0], [0], [1], [0, 0, 1, 1], [], []>} : vector<2x32xf32>, vector<32x96xf32>, vector<2x96xf32> -> vector<2x96xf32>
    %171 = vector.extract_strided_slice %169 {offsets = [0, 0], sizes = [2, 32], strides = [1, 1]} : vector<2x96xf32> to vector<2x32xf32>
    %172 = vector.extract_strided_slice %170 {offsets = [0, 0], sizes = [2, 32], strides = [1, 1]} : vector<2x96xf32> to vector<2x32xf32>
    %173 = arith.addf %171, %172 : vector<2x32xf32>
    %174 = arith.negf %173 : vector<2x32xf32>
    %175 = math.exp %174 : vector<2x32xf32>
    %cst_51 = arith.constant 1.000000e+00 : f32
    %176 = vector.broadcast %cst_51 : f32 to vector<2x32xf32>
    %177 = arith.addf %176, %175 : vector<2x32xf32>
    %178 = arith.divf %176, %177 : vector<2x32xf32>
    %179 = vector.extract_strided_slice %169 {offsets = [0, 32], sizes = [2, 32], strides = [1, 1]} : vector<2x96xf32> to vector<2x32xf32>
    %180 = vector.extract_strided_slice %170 {offsets = [0, 32], sizes = [2, 32], strides = [1, 1]} : vector<2x96xf32> to vector<2x32xf32>
    %181 = arith.addf %179, %180 : vector<2x32xf32>
    %182 = arith.negf %181 : vector<2x32xf32>
    %183 = math.exp %182 : vector<2x32xf32>
    %cst_52 = arith.constant 1.000000e+00 : f32
    %184 = vector.broadcast %cst_52 : f32 to vector<2x32xf32>
    %185 = arith.addf %184, %183 : vector<2x32xf32>
    %186 = arith.divf %184, %185 : vector<2x32xf32>
    %187 = vector.extract_strided_slice %169 {offsets = [0, 64], sizes = [2, 32], strides = [1, 1]} : vector<2x96xf32> to vector<2x32xf32>
    %188 = vector.extract_strided_slice %170 {offsets = [0, 64], sizes = [2, 32], strides = [1, 1]} : vector<2x96xf32> to vector<2x32xf32>
    %189 = arith.addf %188, %16 : vector<2x32xf32>
    %190 = arith.mulf %178, %189 : vector<2x32xf32>
    %191 = arith.addf %187, %190 : vector<2x32xf32>
    %192 = math.tanh %191 : vector<2x32xf32>
    %cst_53 = arith.constant 1.000000e+00 : f32
    %193 = vector.broadcast %cst_53 : f32 to vector<2x32xf32>
    %194 = arith.subf %193, %186 : vector<2x32xf32>
    %195 = arith.mulf %194, %192 : vector<2x32xf32>
    %196 = arith.mulf %186, %167 : vector<2x32xf32>
    %197 = arith.addf %195, %196 : vector<2x32xf32>
    %c10_54 = arith.constant 10 : index
    %c0_55 = arith.constant 0 : index
    %198 = vector.load %arg10[%c10_54, %c0_55] : memref<16x32xf32, #tpu.memory_space<vmem>>, vector<2x32xf32>
    tpu.vector_store %arg10[%c10_54, %c0_55], %197 {strides = array<i32>} : memref<16x32xf32, #tpu.memory_space<vmem>>, vector<2x32xf32>,
    %c12 = arith.constant 12 : index
    %c0_56 = arith.constant 0 : index
    %199 = vector.load %arg11[%c12, %c0_56] : memref<16x96xf32, #tpu.memory_space<vmem>>, vector<2x96xf32>
    %cst_57 = arith.constant dense<0.000000e+00> : vector<2x96xf32>
    %200 = tpu.matmul %197, %14, %cst_57 {dimension_numbers = #tpu.dot_dimension_numbers<[1], [0], [0], [1], [0, 0, 1, 1], [], []>} : vector<2x32xf32>, vector<32x96xf32>, vector<2x96xf32> -> vector<2x96xf32>
    %201 = vector.extract_strided_slice %199 {offsets = [0, 0], sizes = [2, 32], strides = [1, 1]} : vector<2x96xf32> to vector<2x32xf32>
    %202 = vector.extract_strided_slice %200 {offsets = [0, 0], sizes = [2, 32], strides = [1, 1]} : vector<2x96xf32> to vector<2x32xf32>
    %203 = arith.addf %201, %202 : vector<2x32xf32>
    %204 = arith.negf %203 : vector<2x32xf32>
    %205 = math.exp %204 : vector<2x32xf32>
    %cst_58 = arith.constant 1.000000e+00 : f32
    %206 = vector.broadcast %cst_58 : f32 to vector<2x32xf32>
    %207 = arith.addf %206, %205 : vector<2x32xf32>
    %208 = arith.divf %206, %207 : vector<2x32xf32>
    %209 = vector.extract_strided_slice %199 {offsets = [0, 32], sizes = [2, 32], strides = [1, 1]} : vector<2x96xf32> to vector<2x32xf32>
    %210 = vector.extract_strided_slice %200 {offsets = [0, 32], sizes = [2, 32], strides = [1, 1]} : vector<2x96xf32> to vector<2x32xf32>
    %211 = arith.addf %209, %210 : vector<2x32xf32>
    %212 = arith.negf %211 : vector<2x32xf32>
    %213 = math.exp %212 : vector<2x32xf32>
    %cst_59 = arith.constant 1.000000e+00 : f32
    %214 = vector.broadcast %cst_59 : f32 to vector<2x32xf32>
    %215 = arith.addf %214, %213 : vector<2x32xf32>
    %216 = arith.divf %214, %215 : vector<2x32xf32>
    %217 = vector.extract_strided_slice %199 {offsets = [0, 64], sizes = [2, 32], strides = [1, 1]} : vector<2x96xf32> to vector<2x32xf32>
    %218 = vector.extract_strided_slice %200 {offsets = [0, 64], sizes = [2, 32], strides = [1, 1]} : vector<2x96xf32> to vector<2x32xf32>
    %219 = arith.addf %218, %16 : vector<2x32xf32>
    %220 = arith.mulf %208, %219 : vector<2x32xf32>
    %221 = arith.addf %217, %220 : vector<2x32xf32>
    %222 = math.tanh %221 : vector<2x32xf32>
    %cst_60 = arith.constant 1.000000e+00 : f32
    %223 = vector.broadcast %cst_60 : f32 to vector<2x32xf32>
    %224 = arith.subf %223, %216 : vector<2x32xf32>
    %225 = arith.mulf %224, %222 : vector<2x32xf32>
    %226 = arith.mulf %216, %197 : vector<2x32xf32>
    %227 = arith.addf %225, %226 : vector<2x32xf32>
    %c12_61 = arith.constant 12 : index
    %c0_62 = arith.constant 0 : index
    %228 = vector.load %arg10[%c12_61, %c0_62] : memref<16x32xf32, #tpu.memory_space<vmem>>, vector<2x32xf32>
    tpu.vector_store %arg10[%c12_61, %c0_62], %227 {strides = array<i32>} : memref<16x32xf32, #tpu.memory_space<vmem>>, vector<2x32xf32>,
    %c14 = arith.constant 14 : index
    %c0_63 = arith.constant 0 : index
    %229 = vector.load %arg11[%c14, %c0_63] : memref<16x96xf32, #tpu.memory_space<vmem>>, vector<2x96xf32>
    %cst_64 = arith.constant dense<0.000000e+00> : vector<2x96xf32>
    %230 = tpu.matmul %227, %14, %cst_64 {dimension_numbers = #tpu.dot_dimension_numbers<[1], [0], [0], [1], [0, 0, 1, 1], [], []>} : vector<2x32xf32>, vector<32x96xf32>, vector<2x96xf32> -> vector<2x96xf32>
    %231 = vector.extract_strided_slice %229 {offsets = [0, 0], sizes = [2, 32], strides = [1, 1]} : vector<2x96xf32> to vector<2x32xf32>
    %232 = vector.extract_strided_slice %230 {offsets = [0, 0], sizes = [2, 32], strides = [1, 1]} : vector<2x96xf32> to vector<2x32xf32>
    %233 = arith.addf %231, %232 : vector<2x32xf32>
    %234 = arith.negf %233 : vector<2x32xf32>
    %235 = math.exp %234 : vector<2x32xf32>
    %cst_65 = arith.constant 1.000000e+00 : f32
    %236 = vector.broadcast %cst_65 : f32 to vector<2x32xf32>
    %237 = arith.addf %236, %235 : vector<2x32xf32>
    %238 = arith.divf %236, %237 : vector<2x32xf32>
    %239 = vector.extract_strided_slice %229 {offsets = [0, 32], sizes = [2, 32], strides = [1, 1]} : vector<2x96xf32> to vector<2x32xf32>
    %240 = vector.extract_strided_slice %230 {offsets = [0, 32], sizes = [2, 32], strides = [1, 1]} : vector<2x96xf32> to vector<2x32xf32>
    %241 = arith.addf %239, %240 : vector<2x32xf32>
    %242 = arith.negf %241 : vector<2x32xf32>
    %243 = math.exp %242 : vector<2x32xf32>
    %cst_66 = arith.constant 1.000000e+00 : f32
    %244 = vector.broadcast %cst_66 : f32 to vector<2x32xf32>
    %245 = arith.addf %244, %243 : vector<2x32xf32>
    %246 = arith.divf %244, %245 : vector<2x32xf32>
    %247 = vector.extract_strided_slice %229 {offsets = [0, 64], sizes = [2, 32], strides = [1, 1]} : vector<2x96xf32> to vector<2x32xf32>
    %248 = vector.extract_strided_slice %230 {offsets = [0, 64], sizes = [2, 32], strides = [1, 1]} : vector<2x96xf32> to vector<2x32xf32>
    %249 = arith.addf %248, %16 : vector<2x32xf32>
    %250 = arith.mulf %238, %249 : vector<2x32xf32>
    %251 = arith.addf %247, %250 : vector<2x32xf32>
    %252 = math.tanh %251 : vector<2x32xf32>
    %cst_67 = arith.constant 1.000000e+00 : f32
    %253 = vector.broadcast %cst_67 : f32 to vector<2x32xf32>
    %254 = arith.subf %253, %246 : vector<2x32xf32>
    %255 = arith.mulf %254, %252 : vector<2x32xf32>
    %256 = arith.mulf %246, %227 : vector<2x32xf32>
    %257 = arith.addf %255, %256 : vector<2x32xf32>
    %c14_68 = arith.constant 14 : index
    %c0_69 = arith.constant 0 : index
    %258 = vector.load %arg10[%c14_68, %c0_69] : memref<16x32xf32, #tpu.memory_space<vmem>>, vector<2x32xf32>
    tpu.vector_store %arg10[%c14_68, %c0_69], %257 {strides = array<i32>} : memref<16x32xf32, #tpu.memory_space<vmem>>, vector<2x32xf32>,
    %259 = vector.extract_strided_slice %0 {offsets = [1, 0, 0], sizes = [1, 1, 96], strides = [1, 1, 1]} : vector<2x1x128xf32> to vector<1x1x96xf32>
    %260 = vector.shape_cast %259 : vector<1x1x96xf32> to vector<1x96xf32>
    %261 = vector.extract_strided_slice %0 {offsets = [1, 0, 96], sizes = [1, 1, 32], strides = [1, 1, 1]} : vector<2x1x128xf32> to vector<1x1x32xf32>
    %262 = vector.shape_cast %261 : vector<1x1x32xf32> to vector<1x32xf32>
    %c0_70 = arith.constant 0 : index
    %c0_71 = arith.constant 0 : index
    %263 = vector.load %arg10[%c0_70, %c0_71] : memref<16x32xf32, #tpu.memory_space<vmem>>, vector<16x32xf32>
    %c0_72 = arith.constant 0 : index
    %c0_73 = arith.constant 0 : index
    %c0_74 = arith.constant 0 : index
    %264 = vector.load %arg4[%c0_72, %c0_73, %c0_74] : memref<1x32x96xf32, #tpu.memory_space<vmem>>, vector<1x32x96xf32>
    %265 = vector.shape_cast %264 : vector<1x32x96xf32> to vector<32x96xf32>
    %cst_75 = arith.constant dense<0.000000e+00> : vector<16x96xf32>
    %266 = tpu.matmul %263, %265, %cst_75 {dimension_numbers = #tpu.dot_dimension_numbers<[1], [0], [0], [1], [0, 0, 1, 1], [], []>} : vector<16x32xf32>, vector<32x96xf32>, vector<16x96xf32> -> vector<16x96xf32>
    %267 = vector.broadcast %260 : vector<1x96xf32> to vector<16x96xf32>
    %268 = arith.addf %266, %267 : vector<16x96xf32>
    %c0_76 = arith.constant 0 : index
    %c0_77 = arith.constant 0 : index
    %269 = vector.load %arg11[%c0_76, %c0_77] : memref<16x96xf32, #tpu.memory_space<vmem>>, vector<16x96xf32>
    tpu.vector_store %arg11[%c0_76, %c0_77], %268 {strides = array<i32>} : memref<16x96xf32, #tpu.memory_space<vmem>>, vector<16x96xf32>,
    %c1 = arith.constant 1 : index
    %c0_78 = arith.constant 0 : index
    %c0_79 = arith.constant 0 : index
    %270 = vector.load %arg5[%c1, %c0_78, %c0_79] : memref<2x32x96xf32, #tpu.memory_space<vmem>>, vector<1x32x96xf32>
    %271 = vector.shape_cast %270 : vector<1x32x96xf32> to vector<32x96xf32>
    %272 = vector.shape_cast %262 : vector<1x32xf32> to vector<1x32xf32>
    %273 = vector.broadcast %272 : vector<1x32xf32> to vector<2x32xf32>
    %c1_80 = arith.constant 1 : index
    %c0_81 = arith.constant 0 : index
    %c0_82 = arith.constant 0 : index
    %274 = vector.load %arg2[%c1_80, %c0_81, %c0_82] : memref<2x2x32xf32, #tpu.memory_space<vmem>>, vector<1x2x32xf32>
    %275 = vector.shape_cast %274 : vector<1x2x32xf32> to vector<2x32xf32>
    %c0_83 = arith.constant 0 : index
    %c0_84 = arith.constant 0 : index
    %276 = vector.load %arg11[%c0_83, %c0_84] : memref<16x96xf32, #tpu.memory_space<vmem>>, vector<2x96xf32>
    %cst_85 = arith.constant dense<0.000000e+00> : vector<2x96xf32>
    %277 = tpu.matmul %275, %271, %cst_85 {dimension_numbers = #tpu.dot_dimension_numbers<[1], [0], [0], [1], [0, 0, 1, 1], [], []>} : vector<2x32xf32>, vector<32x96xf32>, vector<2x96xf32> -> vector<2x96xf32>
    %278 = vector.extract_strided_slice %276 {offsets = [0, 0], sizes = [2, 32], strides = [1, 1]} : vector<2x96xf32> to vector<2x32xf32>
    %279 = vector.extract_strided_slice %277 {offsets = [0, 0], sizes = [2, 32], strides = [1, 1]} : vector<2x96xf32> to vector<2x32xf32>
    %280 = arith.addf %278, %279 : vector<2x32xf32>
    %281 = arith.negf %280 : vector<2x32xf32>
    %282 = math.exp %281 : vector<2x32xf32>
    %cst_86 = arith.constant 1.000000e+00 : f32
    %283 = vector.broadcast %cst_86 : f32 to vector<2x32xf32>
    %284 = arith.addf %283, %282 : vector<2x32xf32>
    %285 = arith.divf %283, %284 : vector<2x32xf32>
    %286 = vector.extract_strided_slice %276 {offsets = [0, 32], sizes = [2, 32], strides = [1, 1]} : vector<2x96xf32> to vector<2x32xf32>
    %287 = vector.extract_strided_slice %277 {offsets = [0, 32], sizes = [2, 32], strides = [1, 1]} : vector<2x96xf32> to vector<2x32xf32>
    %288 = arith.addf %286, %287 : vector<2x32xf32>
    %289 = arith.negf %288 : vector<2x32xf32>
    %290 = math.exp %289 : vector<2x32xf32>
    %cst_87 = arith.constant 1.000000e+00 : f32
    %291 = vector.broadcast %cst_87 : f32 to vector<2x32xf32>
    %292 = arith.addf %291, %290 : vector<2x32xf32>
    %293 = arith.divf %291, %292 : vector<2x32xf32>
    %294 = vector.extract_strided_slice %276 {offsets = [0, 64], sizes = [2, 32], strides = [1, 1]} : vector<2x96xf32> to vector<2x32xf32>
    %295 = vector.extract_strided_slice %277 {offsets = [0, 64], sizes = [2, 32], strides = [1, 1]} : vector<2x96xf32> to vector<2x32xf32>
    %296 = arith.addf %295, %273 : vector<2x32xf32>
    %297 = arith.mulf %285, %296 : vector<2x32xf32>
    %298 = arith.addf %294, %297 : vector<2x32xf32>
    %299 = math.tanh %298 : vector<2x32xf32>
    %cst_88 = arith.constant 1.000000e+00 : f32
    %300 = vector.broadcast %cst_88 : f32 to vector<2x32xf32>
    %301 = arith.subf %300, %293 : vector<2x32xf32>
    %302 = arith.mulf %301, %299 : vector<2x32xf32>
    %303 = arith.mulf %293, %275 : vector<2x32xf32>
    %304 = arith.addf %302, %303 : vector<2x32xf32>
    %c0_89 = arith.constant 0 : index
    %c0_90 = arith.constant 0 : index
    %305 = vector.load %arg10[%c0_89, %c0_90] : memref<16x32xf32, #tpu.memory_space<vmem>>, vector<2x32xf32>
    tpu.vector_store %arg10[%c0_89, %c0_90], %304 {strides = array<i32>} : memref<16x32xf32, #tpu.memory_space<vmem>>, vector<2x32xf32>,
    %c2_91 = arith.constant 2 : index
    %c0_92 = arith.constant 0 : index
    %306 = vector.load %arg11[%c2_91, %c0_92] : memref<16x96xf32, #tpu.memory_space<vmem>>, vector<2x96xf32>
    %cst_93 = arith.constant dense<0.000000e+00> : vector<2x96xf32>
    %307 = tpu.matmul %304, %271, %cst_93 {dimension_numbers = #tpu.dot_dimension_numbers<[1], [0], [0], [1], [0, 0, 1, 1], [], []>} : vector<2x32xf32>, vector<32x96xf32>, vector<2x96xf32> -> vector<2x96xf32>
    %308 = vector.extract_strided_slice %306 {offsets = [0, 0], sizes = [2, 32], strides = [1, 1]} : vector<2x96xf32> to vector<2x32xf32>
    %309 = vector.extract_strided_slice %307 {offsets = [0, 0], sizes = [2, 32], strides = [1, 1]} : vector<2x96xf32> to vector<2x32xf32>
    %310 = arith.addf %308, %309 : vector<2x32xf32>
    %311 = arith.negf %310 : vector<2x32xf32>
    %312 = math.exp %311 : vector<2x32xf32>
    %cst_94 = arith.constant 1.000000e+00 : f32
    %313 = vector.broadcast %cst_94 : f32 to vector<2x32xf32>
    %314 = arith.addf %313, %312 : vector<2x32xf32>
    %315 = arith.divf %313, %314 : vector<2x32xf32>
    %316 = vector.extract_strided_slice %306 {offsets = [0, 32], sizes = [2, 32], strides = [1, 1]} : vector<2x96xf32> to vector<2x32xf32>
    %317 = vector.extract_strided_slice %307 {offsets = [0, 32], sizes = [2, 32], strides = [1, 1]} : vector<2x96xf32> to vector<2x32xf32>
    %318 = arith.addf %316, %317 : vector<2x32xf32>
    %319 = arith.negf %318 : vector<2x32xf32>
    %320 = math.exp %319 : vector<2x32xf32>
    %cst_95 = arith.constant 1.000000e+00 : f32
    %321 = vector.broadcast %cst_95 : f32 to vector<2x32xf32>
    %322 = arith.addf %321, %320 : vector<2x32xf32>
    %323 = arith.divf %321, %322 : vector<2x32xf32>
    %324 = vector.extract_strided_slice %306 {offsets = [0, 64], sizes = [2, 32], strides = [1, 1]} : vector<2x96xf32> to vector<2x32xf32>
    %325 = vector.extract_strided_slice %307 {offsets = [0, 64], sizes = [2, 32], strides = [1, 1]} : vector<2x96xf32> to vector<2x32xf32>
    %326 = arith.addf %325, %273 : vector<2x32xf32>
    %327 = arith.mulf %315, %326 : vector<2x32xf32>
    %328 = arith.addf %324, %327 : vector<2x32xf32>
    %329 = math.tanh %328 : vector<2x32xf32>
    %cst_96 = arith.constant 1.000000e+00 : f32
    %330 = vector.broadcast %cst_96 : f32 to vector<2x32xf32>
    %331 = arith.subf %330, %323 : vector<2x32xf32>
    %332 = arith.mulf %331, %329 : vector<2x32xf32>
    %333 = arith.mulf %323, %304 : vector<2x32xf32>
    %334 = arith.addf %332, %333 : vector<2x32xf32>
    %c2_97 = arith.constant 2 : index
    %c0_98 = arith.constant 0 : index
    %335 = vector.load %arg10[%c2_97, %c0_98] : memref<16x32xf32, #tpu.memory_space<vmem>>, vector<2x32xf32>
    tpu.vector_store %arg10[%c2_97, %c0_98], %334 {strides = array<i32>} : memref<16x32xf32, #tpu.memory_space<vmem>>, vector<2x32xf32>,
    %c4_99 = arith.constant 4 : index
    %c0_100 = arith.constant 0 : index
    %336 = vector.load %arg11[%c4_99, %c0_100] : memref<16x96xf32, #tpu.memory_space<vmem>>, vector<2x96xf32>
    %cst_101 = arith.constant dense<0.000000e+00> : vector<2x96xf32>
    %337 = tpu.matmul %334, %271, %cst_101 {dimension_numbers = #tpu.dot_dimension_numbers<[1], [0], [0], [1], [0, 0, 1, 1], [], []>} : vector<2x32xf32>, vector<32x96xf32>, vector<2x96xf32> -> vector<2x96xf32>
    %338 = vector.extract_strided_slice %336 {offsets = [0, 0], sizes = [2, 32], strides = [1, 1]} : vector<2x96xf32> to vector<2x32xf32>
    %339 = vector.extract_strided_slice %337 {offsets = [0, 0], sizes = [2, 32], strides = [1, 1]} : vector<2x96xf32> to vector<2x32xf32>
    %340 = arith.addf %338, %339 : vector<2x32xf32>
    %341 = arith.negf %340 : vector<2x32xf32>
    %342 = math.exp %341 : vector<2x32xf32>
    %cst_102 = arith.constant 1.000000e+00 : f32
    %343 = vector.broadcast %cst_102 : f32 to vector<2x32xf32>
    %344 = arith.addf %343, %342 : vector<2x32xf32>
    %345 = arith.divf %343, %344 : vector<2x32xf32>
    %346 = vector.extract_strided_slice %336 {offsets = [0, 32], sizes = [2, 32], strides = [1, 1]} : vector<2x96xf32> to vector<2x32xf32>
    %347 = vector.extract_strided_slice %337 {offsets = [0, 32], sizes = [2, 32], strides = [1, 1]} : vector<2x96xf32> to vector<2x32xf32>
    %348 = arith.addf %346, %347 : vector<2x32xf32>
    %349 = arith.negf %348 : vector<2x32xf32>
    %350 = math.exp %349 : vector<2x32xf32>
    %cst_103 = arith.constant 1.000000e+00 : f32
    %351 = vector.broadcast %cst_103 : f32 to vector<2x32xf32>
    %352 = arith.addf %351, %350 : vector<2x32xf32>
    %353 = arith.divf %351, %352 : vector<2x32xf32>
    %354 = vector.extract_strided_slice %336 {offsets = [0, 64], sizes = [2, 32], strides = [1, 1]} : vector<2x96xf32> to vector<2x32xf32>
    %355 = vector.extract_strided_slice %337 {offsets = [0, 64], sizes = [2, 32], strides = [1, 1]} : vector<2x96xf32> to vector<2x32xf32>
    %356 = arith.addf %355, %273 : vector<2x32xf32>
    %357 = arith.mulf %345, %356 : vector<2x32xf32>
    %358 = arith.addf %354, %357 : vector<2x32xf32>
    %359 = math.tanh %358 : vector<2x32xf32>
    %cst_104 = arith.constant 1.000000e+00 : f32
    %360 = vector.broadcast %cst_104 : f32 to vector<2x32xf32>
    %361 = arith.subf %360, %353 : vector<2x32xf32>
    %362 = arith.mulf %361, %359 : vector<2x32xf32>
    %363 = arith.mulf %353, %334 : vector<2x32xf32>
    %364 = arith.addf %362, %363 : vector<2x32xf32>
    %c4_105 = arith.constant 4 : index
    %c0_106 = arith.constant 0 : index
    %365 = vector.load %arg10[%c4_105, %c0_106] : memref<16x32xf32, #tpu.memory_space<vmem>>, vector<2x32xf32>
    tpu.vector_store %arg10[%c4_105, %c0_106], %364 {strides = array<i32>} : memref<16x32xf32, #tpu.memory_space<vmem>>, vector<2x32xf32>,
    %c6_107 = arith.constant 6 : index
    %c0_108 = arith.constant 0 : index
    %366 = vector.load %arg11[%c6_107, %c0_108] : memref<16x96xf32, #tpu.memory_space<vmem>>, vector<2x96xf32>
    %cst_109 = arith.constant dense<0.000000e+00> : vector<2x96xf32>
    %367 = tpu.matmul %364, %271, %cst_109 {dimension_numbers = #tpu.dot_dimension_numbers<[1], [0], [0], [1], [0, 0, 1, 1], [], []>} : vector<2x32xf32>, vector<32x96xf32>, vector<2x96xf32> -> vector<2x96xf32>
    %368 = vector.extract_strided_slice %366 {offsets = [0, 0], sizes = [2, 32], strides = [1, 1]} : vector<2x96xf32> to vector<2x32xf32>
    %369 = vector.extract_strided_slice %367 {offsets = [0, 0], sizes = [2, 32], strides = [1, 1]} : vector<2x96xf32> to vector<2x32xf32>
    %370 = arith.addf %368, %369 : vector<2x32xf32>
    %371 = arith.negf %370 : vector<2x32xf32>
    %372 = math.exp %371 : vector<2x32xf32>
    %cst_110 = arith.constant 1.000000e+00 : f32
    %373 = vector.broadcast %cst_110 : f32 to vector<2x32xf32>
    %374 = arith.addf %373, %372 : vector<2x32xf32>
    %375 = arith.divf %373, %374 : vector<2x32xf32>
    %376 = vector.extract_strided_slice %366 {offsets = [0, 32], sizes = [2, 32], strides = [1, 1]} : vector<2x96xf32> to vector<2x32xf32>
    %377 = vector.extract_strided_slice %367 {offsets = [0, 32], sizes = [2, 32], strides = [1, 1]} : vector<2x96xf32> to vector<2x32xf32>
    %378 = arith.addf %376, %377 : vector<2x32xf32>
    %379 = arith.negf %378 : vector<2x32xf32>
    %380 = math.exp %379 : vector<2x32xf32>
    %cst_111 = arith.constant 1.000000e+00 : f32
    %381 = vector.broadcast %cst_111 : f32 to vector<2x32xf32>
    %382 = arith.addf %381, %380 : vector<2x32xf32>
    %383 = arith.divf %381, %382 : vector<2x32xf32>
    %384 = vector.extract_strided_slice %366 {offsets = [0, 64], sizes = [2, 32], strides = [1, 1]} : vector<2x96xf32> to vector<2x32xf32>
    %385 = vector.extract_strided_slice %367 {offsets = [0, 64], sizes = [2, 32], strides = [1, 1]} : vector<2x96xf32> to vector<2x32xf32>
    %386 = arith.addf %385, %273 : vector<2x32xf32>
    %387 = arith.mulf %375, %386 : vector<2x32xf32>
    %388 = arith.addf %384, %387 : vector<2x32xf32>
    %389 = math.tanh %388 : vector<2x32xf32>
    %cst_112 = arith.constant 1.000000e+00 : f32
    %390 = vector.broadcast %cst_112 : f32 to vector<2x32xf32>
    %391 = arith.subf %390, %383 : vector<2x32xf32>
    %392 = arith.mulf %391, %389 : vector<2x32xf32>
    %393 = arith.mulf %383, %364 : vector<2x32xf32>
    %394 = arith.addf %392, %393 : vector<2x32xf32>
    %c6_113 = arith.constant 6 : index
    %c0_114 = arith.constant 0 : index
    %395 = vector.load %arg10[%c6_113, %c0_114] : memref<16x32xf32, #tpu.memory_space<vmem>>, vector<2x32xf32>
    tpu.vector_store %arg10[%c6_113, %c0_114], %394 {strides = array<i32>} : memref<16x32xf32, #tpu.memory_space<vmem>>, vector<2x32xf32>,
    %c8_115 = arith.constant 8 : index
    %c0_116 = arith.constant 0 : index
    %396 = vector.load %arg11[%c8_115, %c0_116] : memref<16x96xf32, #tpu.memory_space<vmem>>, vector<2x96xf32>
    %cst_117 = arith.constant dense<0.000000e+00> : vector<2x96xf32>
    %397 = tpu.matmul %394, %271, %cst_117 {dimension_numbers = #tpu.dot_dimension_numbers<[1], [0], [0], [1], [0, 0, 1, 1], [], []>} : vector<2x32xf32>, vector<32x96xf32>, vector<2x96xf32> -> vector<2x96xf32>
    %398 = vector.extract_strided_slice %396 {offsets = [0, 0], sizes = [2, 32], strides = [1, 1]} : vector<2x96xf32> to vector<2x32xf32>
    %399 = vector.extract_strided_slice %397 {offsets = [0, 0], sizes = [2, 32], strides = [1, 1]} : vector<2x96xf32> to vector<2x32xf32>
    %400 = arith.addf %398, %399 : vector<2x32xf32>
    %401 = arith.negf %400 : vector<2x32xf32>
    %402 = math.exp %401 : vector<2x32xf32>
    %cst_118 = arith.constant 1.000000e+00 : f32
    %403 = vector.broadcast %cst_118 : f32 to vector<2x32xf32>
    %404 = arith.addf %403, %402 : vector<2x32xf32>
    %405 = arith.divf %403, %404 : vector<2x32xf32>
    %406 = vector.extract_strided_slice %396 {offsets = [0, 32], sizes = [2, 32], strides = [1, 1]} : vector<2x96xf32> to vector<2x32xf32>
    %407 = vector.extract_strided_slice %397 {offsets = [0, 32], sizes = [2, 32], strides = [1, 1]} : vector<2x96xf32> to vector<2x32xf32>
    %408 = arith.addf %406, %407 : vector<2x32xf32>
    %409 = arith.negf %408 : vector<2x32xf32>
    %410 = math.exp %409 : vector<2x32xf32>
    %cst_119 = arith.constant 1.000000e+00 : f32
    %411 = vector.broadcast %cst_119 : f32 to vector<2x32xf32>
    %412 = arith.addf %411, %410 : vector<2x32xf32>
    %413 = arith.divf %411, %412 : vector<2x32xf32>
    %414 = vector.extract_strided_slice %396 {offsets = [0, 64], sizes = [2, 32], strides = [1, 1]} : vector<2x96xf32> to vector<2x32xf32>
    %415 = vector.extract_strided_slice %397 {offsets = [0, 64], sizes = [2, 32], strides = [1, 1]} : vector<2x96xf32> to vector<2x32xf32>
    %416 = arith.addf %415, %273 : vector<2x32xf32>
    %417 = arith.mulf %405, %416 : vector<2x32xf32>
    %418 = arith.addf %414, %417 : vector<2x32xf32>
    %419 = math.tanh %418 : vector<2x32xf32>
    %cst_120 = arith.constant 1.000000e+00 : f32
    %420 = vector.broadcast %cst_120 : f32 to vector<2x32xf32>
    %421 = arith.subf %420, %413 : vector<2x32xf32>
    %422 = arith.mulf %421, %419 : vector<2x32xf32>
    %423 = arith.mulf %413, %394 : vector<2x32xf32>
    %424 = arith.addf %422, %423 : vector<2x32xf32>
    %c8_121 = arith.constant 8 : index
    %c0_122 = arith.constant 0 : index
    %425 = vector.load %arg10[%c8_121, %c0_122] : memref<16x32xf32, #tpu.memory_space<vmem>>, vector<2x32xf32>
    tpu.vector_store %arg10[%c8_121, %c0_122], %424 {strides = array<i32>} : memref<16x32xf32, #tpu.memory_space<vmem>>, vector<2x32xf32>,
    %c10_123 = arith.constant 10 : index
    %c0_124 = arith.constant 0 : index
    %426 = vector.load %arg11[%c10_123, %c0_124] : memref<16x96xf32, #tpu.memory_space<vmem>>, vector<2x96xf32>
    %cst_125 = arith.constant dense<0.000000e+00> : vector<2x96xf32>
    %427 = tpu.matmul %424, %271, %cst_125 {dimension_numbers = #tpu.dot_dimension_numbers<[1], [0], [0], [1], [0, 0, 1, 1], [], []>} : vector<2x32xf32>, vector<32x96xf32>, vector<2x96xf32> -> vector<2x96xf32>
    %428 = vector.extract_strided_slice %426 {offsets = [0, 0], sizes = [2, 32], strides = [1, 1]} : vector<2x96xf32> to vector<2x32xf32>
    %429 = vector.extract_strided_slice %427 {offsets = [0, 0], sizes = [2, 32], strides = [1, 1]} : vector<2x96xf32> to vector<2x32xf32>
    %430 = arith.addf %428, %429 : vector<2x32xf32>
    %431 = arith.negf %430 : vector<2x32xf32>
    %432 = math.exp %431 : vector<2x32xf32>
    %cst_126 = arith.constant 1.000000e+00 : f32
    %433 = vector.broadcast %cst_126 : f32 to vector<2x32xf32>
    %434 = arith.addf %433, %432 : vector<2x32xf32>
    %435 = arith.divf %433, %434 : vector<2x32xf32>
    %436 = vector.extract_strided_slice %426 {offsets = [0, 32], sizes = [2, 32], strides = [1, 1]} : vector<2x96xf32> to vector<2x32xf32>
    %437 = vector.extract_strided_slice %427 {offsets = [0, 32], sizes = [2, 32], strides = [1, 1]} : vector<2x96xf32> to vector<2x32xf32>
    %438 = arith.addf %436, %437 : vector<2x32xf32>
    %439 = arith.negf %438 : vector<2x32xf32>
    %440 = math.exp %439 : vector<2x32xf32>
    %cst_127 = arith.constant 1.000000e+00 : f32
    %441 = vector.broadcast %cst_127 : f32 to vector<2x32xf32>
    %442 = arith.addf %441, %440 : vector<2x32xf32>
    %443 = arith.divf %441, %442 : vector<2x32xf32>
    %444 = vector.extract_strided_slice %426 {offsets = [0, 64], sizes = [2, 32], strides = [1, 1]} : vector<2x96xf32> to vector<2x32xf32>
    %445 = vector.extract_strided_slice %427 {offsets = [0, 64], sizes = [2, 32], strides = [1, 1]} : vector<2x96xf32> to vector<2x32xf32>
    %446 = arith.addf %445, %273 : vector<2x32xf32>
    %447 = arith.mulf %435, %446 : vector<2x32xf32>
    %448 = arith.addf %444, %447 : vector<2x32xf32>
    %449 = math.tanh %448 : vector<2x32xf32>
    %cst_128 = arith.constant 1.000000e+00 : f32
    %450 = vector.broadcast %cst_128 : f32 to vector<2x32xf32>
    %451 = arith.subf %450, %443 : vector<2x32xf32>
    %452 = arith.mulf %451, %449 : vector<2x32xf32>
    %453 = arith.mulf %443, %424 : vector<2x32xf32>
    %454 = arith.addf %452, %453 : vector<2x32xf32>
    %c10_129 = arith.constant 10 : index
    %c0_130 = arith.constant 0 : index
    %455 = vector.load %arg10[%c10_129, %c0_130] : memref<16x32xf32, #tpu.memory_space<vmem>>, vector<2x32xf32>
    tpu.vector_store %arg10[%c10_129, %c0_130], %454 {strides = array<i32>} : memref<16x32xf32, #tpu.memory_space<vmem>>, vector<2x32xf32>,
    %c12_131 = arith.constant 12 : index
    %c0_132 = arith.constant 0 : index
    %456 = vector.load %arg11[%c12_131, %c0_132] : memref<16x96xf32, #tpu.memory_space<vmem>>, vector<2x96xf32>
    %cst_133 = arith.constant dense<0.000000e+00> : vector<2x96xf32>
    %457 = tpu.matmul %454, %271, %cst_133 {dimension_numbers = #tpu.dot_dimension_numbers<[1], [0], [0], [1], [0, 0, 1, 1], [], []>} : vector<2x32xf32>, vector<32x96xf32>, vector<2x96xf32> -> vector<2x96xf32>
    %458 = vector.extract_strided_slice %456 {offsets = [0, 0], sizes = [2, 32], strides = [1, 1]} : vector<2x96xf32> to vector<2x32xf32>
    %459 = vector.extract_strided_slice %457 {offsets = [0, 0], sizes = [2, 32], strides = [1, 1]} : vector<2x96xf32> to vector<2x32xf32>
    %460 = arith.addf %458, %459 : vector<2x32xf32>
    %461 = arith.negf %460 : vector<2x32xf32>
    %462 = math.exp %461 : vector<2x32xf32>
    %cst_134 = arith.constant 1.000000e+00 : f32
    %463 = vector.broadcast %cst_134 : f32 to vector<2x32xf32>
    %464 = arith.addf %463, %462 : vector<2x32xf32>
    %465 = arith.divf %463, %464 : vector<2x32xf32>
    %466 = vector.extract_strided_slice %456 {offsets = [0, 32], sizes = [2, 32], strides = [1, 1]} : vector<2x96xf32> to vector<2x32xf32>
    %467 = vector.extract_strided_slice %457 {offsets = [0, 32], sizes = [2, 32], strides = [1, 1]} : vector<2x96xf32> to vector<2x32xf32>
    %468 = arith.addf %466, %467 : vector<2x32xf32>
    %469 = arith.negf %468 : vector<2x32xf32>
    %470 = math.exp %469 : vector<2x32xf32>
    %cst_135 = arith.constant 1.000000e+00 : f32
    %471 = vector.broadcast %cst_135 : f32 to vector<2x32xf32>
    %472 = arith.addf %471, %470 : vector<2x32xf32>
    %473 = arith.divf %471, %472 : vector<2x32xf32>
    %474 = vector.extract_strided_slice %456 {offsets = [0, 64], sizes = [2, 32], strides = [1, 1]} : vector<2x96xf32> to vector<2x32xf32>
    %475 = vector.extract_strided_slice %457 {offsets = [0, 64], sizes = [2, 32], strides = [1, 1]} : vector<2x96xf32> to vector<2x32xf32>
    %476 = arith.addf %475, %273 : vector<2x32xf32>
    %477 = arith.mulf %465, %476 : vector<2x32xf32>
    %478 = arith.addf %474, %477 : vector<2x32xf32>
    %479 = math.tanh %478 : vector<2x32xf32>
    %cst_136 = arith.constant 1.000000e+00 : f32
    %480 = vector.broadcast %cst_136 : f32 to vector<2x32xf32>
    %481 = arith.subf %480, %473 : vector<2x32xf32>
    %482 = arith.mulf %481, %479 : vector<2x32xf32>
    %483 = arith.mulf %473, %454 : vector<2x32xf32>
    %484 = arith.addf %482, %483 : vector<2x32xf32>
    %c12_137 = arith.constant 12 : index
    %c0_138 = arith.constant 0 : index
    %485 = vector.load %arg10[%c12_137, %c0_138] : memref<16x32xf32, #tpu.memory_space<vmem>>, vector<2x32xf32>
    tpu.vector_store %arg10[%c12_137, %c0_138], %484 {strides = array<i32>} : memref<16x32xf32, #tpu.memory_space<vmem>>, vector<2x32xf32>,
    %c14_139 = arith.constant 14 : index
    %c0_140 = arith.constant 0 : index
    %486 = vector.load %arg11[%c14_139, %c0_140] : memref<16x96xf32, #tpu.memory_space<vmem>>, vector<2x96xf32>
    %cst_141 = arith.constant dense<0.000000e+00> : vector<2x96xf32>
    %487 = tpu.matmul %484, %271, %cst_141 {dimension_numbers = #tpu.dot_dimension_numbers<[1], [0], [0], [1], [0, 0, 1, 1], [], []>} : vector<2x32xf32>, vector<32x96xf32>, vector<2x96xf32> -> vector<2x96xf32>
    %488 = vector.extract_strided_slice %486 {offsets = [0, 0], sizes = [2, 32], strides = [1, 1]} : vector<2x96xf32> to vector<2x32xf32>
    %489 = vector.extract_strided_slice %487 {offsets = [0, 0], sizes = [2, 32], strides = [1, 1]} : vector<2x96xf32> to vector<2x32xf32>
    %490 = arith.addf %488, %489 : vector<2x32xf32>
    %491 = arith.negf %490 : vector<2x32xf32>
    %492 = math.exp %491 : vector<2x32xf32>
    %cst_142 = arith.constant 1.000000e+00 : f32
    %493 = vector.broadcast %cst_142 : f32 to vector<2x32xf32>
    %494 = arith.addf %493, %492 : vector<2x32xf32>
    %495 = arith.divf %493, %494 : vector<2x32xf32>
    %496 = vector.extract_strided_slice %486 {offsets = [0, 32], sizes = [2, 32], strides = [1, 1]} : vector<2x96xf32> to vector<2x32xf32>
    %497 = vector.extract_strided_slice %487 {offsets = [0, 32], sizes = [2, 32], strides = [1, 1]} : vector<2x96xf32> to vector<2x32xf32>
    %498 = arith.addf %496, %497 : vector<2x32xf32>
    %499 = arith.negf %498 : vector<2x32xf32>
    %500 = math.exp %499 : vector<2x32xf32>
    %cst_143 = arith.constant 1.000000e+00 : f32
    %501 = vector.broadcast %cst_143 : f32 to vector<2x32xf32>
    %502 = arith.addf %501, %500 : vector<2x32xf32>
    %503 = arith.divf %501, %502 : vector<2x32xf32>
    %504 = vector.extract_strided_slice %486 {offsets = [0, 64], sizes = [2, 32], strides = [1, 1]} : vector<2x96xf32> to vector<2x32xf32>
    %505 = vector.extract_strided_slice %487 {offsets = [0, 64], sizes = [2, 32], strides = [1, 1]} : vector<2x96xf32> to vector<2x32xf32>
    %506 = arith.addf %505, %273 : vector<2x32xf32>
    %507 = arith.mulf %495, %506 : vector<2x32xf32>
    %508 = arith.addf %504, %507 : vector<2x32xf32>
    %509 = math.tanh %508 : vector<2x32xf32>
    %cst_144 = arith.constant 1.000000e+00 : f32
    %510 = vector.broadcast %cst_144 : f32 to vector<2x32xf32>
    %511 = arith.subf %510, %503 : vector<2x32xf32>
    %512 = arith.mulf %511, %509 : vector<2x32xf32>
    %513 = arith.mulf %503, %484 : vector<2x32xf32>
    %514 = arith.addf %512, %513 : vector<2x32xf32>
    %c14_145 = arith.constant 14 : index
    %c0_146 = arith.constant 0 : index
    %515 = vector.load %arg10[%c14_145, %c0_146] : memref<16x32xf32, #tpu.memory_space<vmem>>, vector<2x32xf32>
    tpu.vector_store %arg10[%c14_145, %c0_146], %514 {strides = array<i32>} : memref<16x32xf32, #tpu.memory_space<vmem>>, vector<2x32xf32>,
    %c0_147 = arith.constant 0 : index
    %c0_148 = arith.constant 0 : index
    %516 = vector.load %arg10[%c0_147, %c0_148] : memref<16x32xf32, #tpu.memory_space<vmem>>, vector<16x32xf32>
    %c0_149 = arith.constant 0 : index
    %c0_150 = arith.constant 0 : index
    %517 = vector.load %arg7[%c0_149, %c0_150] : memref<32x8xf32, #tpu.memory_space<vmem>>, vector<32x8xf32>
    %cst_151 = arith.constant dense<0.000000e+00> : vector<16x8xf32>
    %518 = tpu.matmul %516, %517, %cst_151 {dimension_numbers = #tpu.dot_dimension_numbers<[1], [0], [0], [1], [0, 0, 1, 1], [], []>} : vector<16x32xf32>, vector<32x8xf32>, vector<16x8xf32> -> vector<16x8xf32>
    %c0_152 = arith.constant 0 : index
    %c0_153 = arith.constant 0 : index
    %519 = vector.load %arg8[%c0_152, %c0_153] : memref<1x8xf32, #tpu.memory_space<vmem>>, vector<1x8xf32>
    %520 = vector.broadcast %519 : vector<1x8xf32> to vector<16x8xf32>
    %521 = arith.addf %518, %520 : vector<16x8xf32>
    %c0_154 = arith.constant 0 : index
    %c0_155 = arith.constant 0 : index
    %522 = vector.load %arg9[%c0_154, %c0_155] : memref<16x8xf32, #tpu.memory_space<vmem>>, vector<16x8xf32>
    tpu.vector_store %arg9[%c0_154, %c0_155], %521 {strides = array<i32>} : memref<16x8xf32, #tpu.memory_space<vmem>>, vector<16x8xf32>,
    return
  }
  func.func @transform_0(%arg0: i32) -> (i32, i32) {
    %c0_i32 = arith.constant 0 : i32
    %c0_i32_0 = arith.constant 0 : i32
    %c0_i32_1 = arith.constant 0 : i32
    return %c0_i32, %c0_i32_0 : i32, i32
  }
  func.func @transform_1(%arg0: i32) -> (i32, i32, i32) {
    %c0_i32 = arith.constant 0 : i32
    %c0_i32_0 = arith.constant 0 : i32
    %c0_i32_1 = arith.constant 0 : i32
    %c0_i32_2 = arith.constant 0 : i32
    return %c0_i32, %c0_i32_0, %c0_i32_1 : i32, i32, i32
  }
  func.func @transform_2(%arg0: i32) -> (i32, i32) {
    %c0_i32 = arith.constant 0 : i32
    %c0_i32_0 = arith.constant 0 : i32
    %c0_i32_1 = arith.constant 0 : i32
    return %c0_i32, %c0_i32_0 : i32, i32
  }
  func.func @transform_3(%arg0: i32) -> (i32, i32, i32) {
    %c0_i32 = arith.constant 0 : i32
    %c0_i32_0 = arith.constant 0 : i32
    %c0_i32_1 = arith.constant 0 : i32
    %c0_i32_2 = arith.constant 0 : i32
    return %c0_i32, %c0_i32_0, %c0_i32_1 : i32, i32, i32
  }
  func.func @transform_4(%arg0: i32) -> (i32, i32, i32) {
    %c0_i32 = arith.constant 0 : i32
    %c0_i32_0 = arith.constant 0 : i32
    %c0_i32_1 = arith.constant 0 : i32
    %c0_i32_2 = arith.constant 0 : i32
    return %c0_i32, %c0_i32_0, %c0_i32_1 : i32, i32, i32
  }
  func.func @transform_5(%arg0: i32) -> (i32, i32, i32) {
    %c0_i32 = arith.constant 0 : i32
    %c0_i32_0 = arith.constant 0 : i32
    %c0_i32_1 = arith.constant 0 : i32
    %c0_i32_2 = arith.constant 0 : i32
    return %c0_i32, %c0_i32_0, %c0_i32_1 : i32, i32, i32
  }
  func.func @transform_6(%arg0: i32) -> (i32, i32) {
    %c0_i32 = arith.constant 0 : i32
    %c0_i32_0 = arith.constant 0 : i32
    %c0_i32_1 = arith.constant 0 : i32
    return %c0_i32, %c0_i32_0 : i32, i32
  }
  func.func @transform_7(%arg0: i32) -> (i32, i32) {
    %c0_i32 = arith.constant 0 : i32
    %c0_i32_0 = arith.constant 0 : i32
    %c0_i32_1 = arith.constant 0 : i32
    return %c0_i32, %c0_i32_0 : i32, i32
  }
  func.func @transform_8(%arg0: i32) -> (i32, i32) {
    %c0_i32 = arith.constant 0 : i32
    %c0_i32_0 = arith.constant 0 : i32
    %c0_i32_1 = arith.constant 0 : i32
    return %c0_i32, %c0_i32_0 : i32, i32
  }
}

</mosaic_0001>

<llo_original>
// kernel: tpu_custom_call.1
$region0: #{tpu_custom_call.1}
  #allocation0 [shape = 'u32[]', space=smem, size = 0x4, offset = 0x4, fixed_abs, tag = 'smem constant byte address 0x4 - core index']
  #allocation1 [shape = 'u32[144,128]{1,0:T(1,128)}', space=vmem, size = 0x12000, scoped, tag = 'internal scratch']
  #allocation2 [shape = 'f32[16,32]{1,0:T(8,128)}', space=vmem, size = 0x2000, scoped, tag = 'scratch operand']
  #allocation3 [shape = 'f32[16,96]{1,0:T(8,128)}', space=vmem, size = 0x2000, scoped, tag = 'scratch operand']
  %s0 = inlined_call_operand.vmem [shape: f32[16,1], index: 0, kind: input, shape index: {}]
  %s1 = inlined_call_operand.hbm [shape: f32[2,2,32], index: 1, kind: input, shape index: {}]
  %s2 = inlined_call_operand.vmem [shape: f32[1,96], index: 2, kind: input, shape index: {}]
  %s3 = inlined_call_operand.hbm [shape: f32[1,32,96], index: 3, kind: input, shape index: {}]
  %s4 = inlined_call_operand.vmem [shape: f32[2,32,96], index: 4, kind: input, shape index: {}]
  %s5 = inlined_call_operand.vmem [shape: f32[2,1,128], index: 5, kind: input, shape index: {}]
  %s6 = inlined_call_operand.vmem [shape: f32[32,8], index: 6, kind: input, shape index: {}]
  %s7 = inlined_call_operand.vmem [shape: f32[1,8], index: 7, kind: input, shape index: {}]
  %s8 = inlined_call_operand.vmem [shape: f32[16,8], index: 8, kind: output, shape index: {}]
  %s9 = sld [smem:[#allocation0]]
  $region50: #{tpu_custom_call.1} parent=0
    _
  %s11 = ssub.s32 1, %s9
  %s12 = scalar_select 0, %s11, %s9
  $region1: #{tpu_custom_call.1} parent=0
    #allocation4 [shape = 'u8[2048]{0}', space=vmem, size = 0x800, scoped, tag = 'input window, operand 1, single buffered']
    #allocation5 [shape = 's32[1]{0}', space=sflag, size = 0x4, scoped, tag = 'scoped memory for tpu_custom_call.1']
    #allocation6 [shape = 'u8[16384]{0}', space=vmem, size = 0x4000, scoped, tag = 'input window, operand 3, single buffered']
    #allocation7 [shape = 's32[1]{0}', space=sflag, size = 0x4, scoped, tag = 'scoped memory for tpu_custom_call.1']
    %13 = vsyncpa [#allocation5], 0
    %14 = vsyncpa [#allocation7], 0
    // Predicated region
    $region2: #{tpu_custom_call.1} parent=1 // pred_check
      _
    $region3: #{tpu_custom_call.1} parent=1 // pred_check_branch
      %16 = sbr.rel (0) target = $region5
    $region4: #{tpu_custom_call.1} parent=1 // pred_region
      _
    $region5: #{tpu_custom_call.1} parent=1 // pred_fallthru
      _
    // Predicated region
    $region6: #{tpu_custom_call.1} parent=1 // pred_check
      _
    $region7: #{tpu_custom_call.1} parent=1 // pred_check_branch
      %18 = sbr.rel (0) target = $region9
    $region8: #{tpu_custom_call.1} parent=1 // pred_region
      %s20 = ssub.s32 64, 64
      %21 = vsyncadd [#allocation5], %s20
      %s22 = sshll.u32 [#allocation4], 4
      %s23 = int_to_ptr.vmem [resolvable:$true] %s22
      %28 = dma.hbm_to_vmem [thread:$0]  %s1, 64, %s23, [#allocation5], 32, 32, 2
    $region9: #{tpu_custom_call.1} parent=1 // pred_fallthru
      _
    // Predicated region
    $region10: #{tpu_custom_call.1} parent=1 // pred_check
      _
    $region11: #{tpu_custom_call.1} parent=1 // pred_check_branch
      %30 = sbr.rel (0) target = $region13
    $region12: #{tpu_custom_call.1} parent=1 // pred_region
      _
    $region13: #{tpu_custom_call.1} parent=1 // pred_fallthru
      _
    // Predicated region
    $region14: #{tpu_custom_call.1} parent=1 // pred_check
      _
    $region15: #{tpu_custom_call.1} parent=1 // pred_check_branch
      %32 = sbr.rel (0) target = $region17
    $region16: #{tpu_custom_call.1} parent=1 // pred_region
      %s34 = ssub.s32 512, 512
      %35 = vsyncadd [#allocation7], %s34
      %s36 = sshll.u32 [#allocation6], 4
      %s37 = int_to_ptr.vmem [resolvable:$true] %s36
      %42 = dma.hbm_to_vmem [thread:$0]  %s3, 512, %s37, [#allocation7], 128, 128, 8
    $region17: #{tpu_custom_call.1} parent=1 // pred_fallthru
      _
    // Predicated region
    $region18: #{tpu_custom_call.1} parent=1 // pred_check
      _
    $region19: #{tpu_custom_call.1} parent=1 // pred_check_branch
      %44 = sbr.rel (0) target = $region21
    $region20: #{tpu_custom_call.1} parent=1 // pred_region
      _
    $region21: #{tpu_custom_call.1} parent=1 // pred_fallthru
      _
    // Predicated region
    $region22: #{tpu_custom_call.1} parent=1 // pred_check
      _
    $region23: #{tpu_custom_call.1} parent=1 // pred_check_branch
      %46 = sbr.rel (0) target = $region25
    $region24: #{tpu_custom_call.1} parent=1 // pred_region
      _
    $region25: #{tpu_custom_call.1} parent=1 // pred_fallthru
      _
    // Predicated region
    $region26: #{tpu_custom_call.1} parent=1 // pred_check
      _
    $region27: #{tpu_custom_call.1} parent=1 // pred_check_branch
      %48 = sbr.rel (0) target = $region29
    $region28: #{tpu_custom_call.1} parent=1 // pred_region
      _
    $region29: #{tpu_custom_call.1} parent=1 // pred_fallthru
      _
    // Predicated region
    $region30: #{tpu_custom_call.1} parent=1 // pred_check
      _
    $region31: #{tpu_custom_call.1} parent=1 // pred_check_branch
      %50 = sbr.rel (0) target = $region33
    $region32: #{tpu_custom_call.1} parent=1 // pred_region
      _
    $region33: #{tpu_custom_call.1} parent=1 // pred_fallthru
      _
    // Predicated region
    $region34: #{tpu_custom_call.1} parent=1 // pred_check
      _
    $region35: #{tpu_custom_call.1} parent=1 // pred_check_branch
      %52 = sbr.rel (0) target = $region37
    $region36: #{tpu_custom_call.1} parent=1 // pred_region
      %53 = dma.done [#allocation5], 64
    $region37: #{tpu_custom_call.1} parent=1 // pred_fallthru
      _
    // Predicated region
    $region38: #{tpu_custom_call.1} parent=1 // pred_check
      _
    $region39: #{tpu_custom_call.1} parent=1 // pred_check_branch
      %55 = sbr.rel (0) target = $region41
    $region40: #{tpu_custom_call.1} parent=1 // pred_region
      %56 = dma.done [#allocation7], 512
    $region41: #{tpu_custom_call.1} parent=1 // pred_fallthru
      _
    %v57 = vld [vmem:[%s5] sm:$0x1]
    %v58 = vld [vmem:[%s5 + $0x1] sm:$0x1]
    %v59 = vld [vmem:[%s0] sm:$0xff]
    %v60 = vld [vmem:[%s0 + $0x8] sm:$0xff]
    %v61 = vld [vmem:[%s2] sm:$0x1]
    %63 = vset.pattern.permute.xlu0 0
    %64 = vperm.xlu0 %63, %v59
    %v65 = vpop.permute.xlu0 %64
    %68 = vset.pattern.permute.xlu0 0
    %69 = vperm.xlu0 %68, %v60
    %v70 = vpop.permute.xlu0 %69
    %v73 = vlaneseq
    %v74 = vshrl.u32 %v73, 7
    %v75 = vsub.s32 0, %v74
    %v76 = vrot.slane %v61, %v75
    %v78 = vmul.f32 %v65, %v76
    %v79 = vmul.f32 %v70, %v76
    %v81 = vlaneseq
    %v82 = vshrl.u32 %v81, 7
    %v83 = vsub.s32 0, %v82
    %v84 = vrot.slane %v57, %v83
    %v86 = vadd.f32 %v78, %v84
    %v87 = vadd.f32 %v79, %v84
    %vm88 = vcmask 785408
    %89 = vst.msk [vmem:[#allocation3] sm:$0xff] %vm88, %v86
    %90 = vst.msk [vmem:[#allocation3 + $0x8] sm:$0xff] %vm88, %v87
    %v91 = vld [vmem:[%s4] sm:$0xff]
    %v92 = vld [vmem:[%s4 + $0x8] sm:$0xff]
    %v93 = vld [vmem:[%s4 + $0x10] sm:$0xff]
    %v94 = vld [vmem:[%s4 + $0x18] sm:$0xff]
    %v95 = vld [vmem:[#allocation4] sm:$0x3]
    %v96 = vld [vmem:[#allocation3] sm:$0x3]
    %vm97 = vcmask 261120
    %v99 = vsel %vm97, %v95, 0
    %101 = vmatprep.subr.mxu0 0.0
    %102 = vmatpush1.msra.mxu0 %v91
    %103 = vmatprep.subr.mxu0 0.0
    %104 = vmatpush1.msra.mxu0 %v92
    %105 = vmatprep.subr.mxu0 0.0
    %106 = vmatpush1.msra.mxu0 %v93
    %107 = vmatprep.subr.mxu0 0.0
    %108 = vmatpush1.msra.mxu0 %v94
    %109 = vmatprep.subr.mxu0 0.0
    %110 = vmatpush1.msra.mxu0 0.0
    %111 = vmatprep.subr.mxu0 0.0
    %112 = vmatpush1.msra.mxu0 0.0
    %113 = vmatprep.subr.mxu0 0.0
    %114 = vmatpush1.msra.mxu0 0.0
    %115 = vmatprep.subr.mxu0 0.0
    %116 = vmatpush1.msra.mxu0 0.0
    %117 = vmatprep.subr.mxu0 0.0
    %118 = vmatpush1.msra.mxu0 0.0
    %119 = vmatprep.subr.mxu0 0.0
    %120 = vmatpush1.msra.mxu0 0.0
    %121 = vmatprep.subr.mxu0 0.0
    %122 = vmatpush1.msra.mxu0 0.0
    %123 = vmatprep.subr.mxu0 0.0
    %124 = vmatpush1.msra.mxu0 0.0
    %125 = vmatprep.subr.mxu0 0.0
    %126 = vmatpush1.msra.mxu0 0.0
    %127 = vmatprep.subr.mxu0 0.0
    %128 = vmatpush1.msra.mxu0 0.0
    %129 = vmatprep.subr.mxu0 0.0
    %130 = vmatpush1.msra.mxu0 0.0
    %131 = vmatprep.subr.mxu0 0.0
    %132 = vmatpush1.msra.mxu0 0.0
    %133 = vmatprep.subr.mxu0 0.0
    %134 = vmatpush1.msra.mxu0 0.0
    %135 = vmatprep.subr.mxu0 0.0
    %136 = vmatpush1.msra.mxu0 0.0
    %137 = vmatprep.subr.mxu0 0.0
    %138 = vmatpush1.msra.mxu0 0.0
    %139 = vmatprep.subr.mxu0 0.0
    %140 = vmatpush1.msra.mxu0 0.0
    %141 = vmatprep.subr.mxu0 0.0
    %142 = vmatpush1.msra.mxu0 0.0
    %143 = vmatprep.subr.mxu0 0.0
    %144 = vmatpush1.msra.mxu0 0.0
    %145 = vmatprep.subr.mxu0 0.0
    %146 = vmatpush1.msra.mxu0 0.0
    %147 = vmatprep.subr.mxu0 0.0
    %148 = vmatpush1.msra.mxu0 0.0
    %149 = vmatprep.subr.mxu0 0.0
    %150 = vmatpush1.msra.mxu0 0.0
    %151 = vmatprep.subr.mxu0 0.0
    %152 = vmatpush1.msra.mxu0 0.0
    %153 = vmatprep.subr.mxu0 0.0
    %154 = vmatpush1.msra.mxu0 0.0
    %155 = vmatprep.subr.mxu0 0.0
    %156 = vmatpush1.msra.mxu0 0.0
    %157 = vmatprep.subr.mxu0 0.0
    %158 = vmatpush1.msra.mxu0 0.0
    %159 = vmatprep.subr.mxu0 0.0
    %160 = vmatpush1.msra.mxu0 0.0
    %161 = vmatprep.subr.mxu0 0.0
    %162 = vmatpush1.msra.mxu0 0.0
    %163 = vmatprep.subr.mxu0 0.0
    %164 = vmatpush1.msra.mxu0 0.0
    %165 = vmatprep.mubr.f32.mxu0 0.0
    %166 = vmatmul.mubr.f32.gmra.mrb[0].mxu0 %v99
    %v167 = vpop.f32.mrb[0].mxu0
    %v168 = vadd.f32 0.0, %v167
    %v169 = vpop.f32.mrb[0].mxu0
    %170 = vdwg.mxu0
    %v171 = vadd.f32 %v96, %v168
    %v172 = vxor.u32 %v171, 2147483648
    %v173 = vmul.f32 %v172, 1.442695
    %v174 = vpow.pop %v173
    %v175 = vadd.f32 %v174, 1.0
    %v176 = vrcp.pop %v175
    %v177 = vmul.f32 1.0, %v176
    %178 = vrot.lane.b32.xlu0 %v84, 96
    %v179 = vpop.permute.xlu0 %178
    %v181 = vadd.f32 %v168, %v179
    %183 = vrot.lane.b32.xlu0 %v181, 64
    %v184 = vpop.permute.xlu0 %183
    %v186 = vmul.f32 %v177, %v184
    %188 = vrot.lane.b32.xlu0 %v186, 64
    %v189 = vpop.permute.xlu0 %188
    %v191 = vadd.f32 %v96, %v189
    %v192 = vtanh.pop %v191
    %v193 = vsub.f32 1.0, %v177
    %195 = vrot.lane.b32.xlu0 %v192, 96
    %v196 = vpop.permute.xlu0 %195
    %v198 = vmul.f32 %v193, %v196
    %199 = vrot.lane.b32.xlu0 %v95, 32
    %v200 = vpop.permute.xlu0 %199
    %v202 = vmul.f32 %v177, %v200
    %v203 = vadd.f32 %v198, %v202
    %205 = vrot.lane.b32.xlu0 %v203, 96
    %v206 = vpop.permute.xlu0 %205
    %vm208 = vcmask 254976
    %209 = vst.msk [vmem:[#allocation2] sm:$0x3] %vm208, %v206
    %v210 = vld [vmem:[#allocation3 + $0x2] sm:$0x3]
    %v211 = vsel %vm97, %v206, 0
    %213 = vmatprep.subr.mxu0 0.0
    %214 = vmatpush1.msra.mxu0 %v91
    %215 = vmatprep.subr.mxu0 0.0
    %216 = vmatpush1.msra.mxu0 %v92
    %217 = vmatprep.subr.mxu0 0.0
    %218 = vmatpush1.msra.mxu0 %v93
    %219 = vmatprep.subr.mxu0 0.0
    %220 = vmatpush1.msra.mxu0 %v94
    %221 = vmatprep.subr.mxu0 0.0
    %222 = vmatpush1.msra.mxu0 0.0
    %223 = vmatprep.subr.mxu0 0.0
    %224 = vmatpush1.msra.mxu0 0.0
    %225 = vmatprep.subr.mxu0 0.0
    %226 = vmatpush1.msra.mxu0 0.0
    %227 = vmatprep.subr.mxu0 0.0
    %228 = vmatpush1.msra.mxu0 0.0
    %229 = vmatprep.subr.mxu0 0.0
    %230 = vmatpush1.msra.mxu0 0.0
    %231 = vmatprep.subr.mxu0 0.0
    %232 = vmatpush1.msra.mxu0 0.0
    %233 = vmatprep.subr.mxu0 0.0
    %234 = vmatpush1.msra.mxu0 0.0
    %235 = vmatprep.subr.mxu0 0.0
    %236 = vmatpush1.msra.mxu0 0.0
    %237 = vmatprep.subr.mxu0 0.0
    %238 = vmatpush1.msra.mxu0 0.0
    %239 = vmatprep.subr.mxu0 0.0
    %240 = vmatpush1.msra.mxu0 0.0
    %241 = vmatprep.subr.mxu0 0.0
    %242 = vmatpush1.msra.mxu0 0.0
    %243 = vmatprep.subr.mxu0 0.0
    %244 = vmatpush1.msra.mxu0 0.0
    %245 = vmatprep.subr.mxu0 0.0
    %246 = vmatpush1.msra.mxu0 0.0
    %247 = vmatprep.subr.mxu0 0.0
    %248 = vmatpush1.msra.mxu0 0.0
    %249 = vmatprep.subr.mxu0 0.0
    %250 = vmatpush1.msra.mxu0 0.0
    %251 = vmatprep.subr.mxu0 0.0
    %252 = vmatpush1.msra.mxu0 0.0
    %253 = vmatprep.subr.mxu0 0.0
    %254 = vmatpush1.msra.mxu0 0.0
    %255 = vmatprep.subr.mxu0 0.0
    %256 = vmatpush1.msra.mxu0 0.0
    %257 = vmatprep.subr.mxu0 0.0
    %258 = vmatpush1.msra.mxu0 0.0
    %259 = vmatprep.subr.mxu0 0.0
    %260 = vmatpush1.msra.mxu0 0.0
    %261 = vmatprep.subr.mxu0 0.0
    %262 = vmatpush1.msra.mxu0 0.0
    %263 = vmatprep.subr.mxu0 0.0
    %264 = vmatpush1.msra.mxu0 0.0
    %265 = vmatprep.subr.mxu0 0.0
    %266 = vmatpush1.msra.mxu0 0.0
    %267 = vmatprep.subr.mxu0 0.0
    %268 = vmatpush1.msra.mxu0 0.0
    %269 = vmatprep.subr.mxu0 0.0
    %270 = vmatpush1.msra.mxu0 0.0
    %271 = vmatprep.subr.mxu0 0.0
    %272 = vmatpush1.msra.mxu0 0.0
    %273 = vmatprep.subr.mxu0 0.0
    %274 = vmatpush1.msra.mxu0 0.0
    %275 = vmatprep.subr.mxu0 0.0
    %276 = vmatpush1.msra.mxu0 0.0
    %277 = vmatprep.mubr.f32.mxu0 0.0
    %278 = vmatmul.mubr.f32.gmra.mrb[0].mxu0 %v211
    %v279 = vpop.f32.mrb[0].mxu0
    %v280 = vadd.f32 0.0, %v279
    %v281 = vpop.f32.mrb[0].mxu0
    %282 = vdwg.mxu0
    %v283 = vadd.f32 %v210, %v280
    %v284 = vxor.u32 %v283, 2147483648
    %v285 = vmul.f32 %v284, 1.442695
    %v286 = vpow.pop %v285
    %v287 = vadd.f32 %v286, 1.0
    %v288 = vrcp.pop %v287
    %v289 = vmul.f32 1.0, %v288
    %v290 = vadd.f32 %v280, %v179
    %292 = vrot.lane.b32.xlu0 %v290, 64
    %v293 = vpop.permute.xlu0 %292
    %v295 = vmul.f32 %v289, %v293
    %297 = vrot.lane.b32.xlu0 %v295, 64
    %v298 = vpop.permute.xlu0 %297
    %v300 = vadd.f32 %v210, %v298
    %v301 = vtanh.pop %v300
    %v302 = vsub.f32 1.0, %v289
    %304 = vrot.lane.b32.xlu0 %v301, 96
    %v305 = vpop.permute.xlu0 %304
    %v307 = vmul.f32 %v302, %v305
    %v308 = vmul.f32 %v289, %v203
    %v309 = vadd.f32 %v307, %v308
    %311 = vrot.lane.b32.xlu0 %v309, 96
    %v312 = vpop.permute.xlu0 %311
    %314 = vst.msk [vmem:[#allocation2 + $0x2] sm:$0x3] %vm208, %v312
    %v315 = vld [vmem:[#allocation3 + $0x4] sm:$0x3]
    %v316 = vsel %vm97, %v312, 0
    %318 = vmatprep.subr.mxu0 0.0
    %319 = vmatpush1.msra.mxu0 %v91
    %320 = vmatprep.subr.mxu0 0.0
    %321 = vmatpush1.msra.mxu0 %v92
    %322 = vmatprep.subr.mxu0 0.0
    %323 = vmatpush1.msra.mxu0 %v93
    %324 = vmatprep.subr.mxu0 0.0
    %325 = vmatpush1.msra.mxu0 %v94
    %326 = vmatprep.subr.mxu0 0.0
    %327 = vmatpush1.msra.mxu0 0.0
    %328 = vmatprep.subr.mxu0 0.0
    %329 = vmatpush1.msra.mxu0 0.0
    %330 = vmatprep.subr.mxu0 0.0
    %331 = vmatpush1.msra.mxu0 0.0
    %332 = vmatprep.subr.mxu0 0.0
    %333 = vmatpush1.msra.mxu0 0.0
    %334 = vmatprep.subr.mxu0 0.0
    %335 = vmatpush1.msra.mxu0 0.0
    %336 = vmatprep.subr.mxu0 0.0
    %337 = vmatpush1.msra.mxu0 0.0
    %338 = vmatprep.subr.mxu0 0.0
    %339 = vmatpush1.msra.mxu0 0.0
    %340 = vmatprep.subr.mxu0 0.0
    %341 = vmatpush1.msra.mxu0 0.0
    %342 = vmatprep.subr.mxu0 0.0
    %343 = vmatpush1.msra.mxu0 0.0
    %344 = vmatprep.subr.mxu0 0.0
    %345 = vmatpush1.msra.mxu0 0.0
    %346 = vmatprep.subr.mxu0 0.0
    %347 = vmatpush1.msra.mxu0 0.0
    %348 = vmatprep.subr.mxu0 0.0
    %349 = vmatpush1.msra.mxu0 0.0
    %350 = vmatprep.subr.mxu0 0.0
    %351 = vmatpush1.msra.mxu0 0.0
    %352 = vmatprep.subr.mxu0 0.0
    %353 = vmatpush1.msra.mxu0 0.0
    %354 = vmatprep.subr.mxu0 0.0
    %355 = vmatpush1.msra.mxu0 0.0
    %356 = vmatprep.subr.mxu0 0.0
    %357 = vmatpush1.msra.mxu0 0.0
    %358 = vmatprep.subr.mxu0 0.0
    %359 = vmatpush1.msra.mxu0 0.0
    %360 = vmatprep.subr.mxu0 0.0
    %361 = vmatpush1.msra.mxu0 0.0
    %362 = vmatprep.subr.mxu0 0.0
    %363 = vmatpush1.msra.mxu0 0.0
    %364 = vmatprep.subr.mxu0 0.0
    %365 = vmatpush1.msra.mxu0 0.0
    %366 = vmatprep.subr.mxu0 0.0
    %367 = vmatpush1.msra.mxu0 0.0
    %368 = vmatprep.subr.mxu0 0.0
    %369 = vmatpush1.msra.mxu0 0.0
    %370 = vmatprep.subr.mxu0 0.0
    %371 = vmatpush1.msra.mxu0 0.0
    %372 = vmatprep.subr.mxu0 0.0
    %373 = vmatpush1.msra.mxu0 0.0
    %374 = vmatprep.subr.mxu0 0.0
    %375 = vmatpush1.msra.mxu0 0.0
    %376 = vmatprep.subr.mxu0 0.0
    %377 = vmatpush1.msra.mxu0 0.0
    %378 = vmatprep.subr.mxu0 0.0
    %379 = vmatpush1.msra.mxu0 0.0
    %380 = vmatprep.subr.mxu0 0.0
    %381 = vmatpush1.msra.mxu0 0.0
    %382 = vmatprep.mubr.f32.mxu0 0.0
    %383 = vmatmul.mubr.f32.gmra.mrb[0].mxu0 %v316
    %v384 = vpop.f32.mrb[0].mxu0
    %v385 = vadd.f32 0.0, %v384
    %v386 = vpop.f32.mrb[0].mxu0
    %387 = vdwg.mxu0
    %v388 = vadd.f32 %v315, %v385
    %v389 = vxor.u32 %v388, 2147483648
    %v390 = vmul.f32 %v389, 1.442695
    %v391 = vpow.pop %v390
    %v392 = vadd.f32 %v391, 1.0
    %v393 = vrcp.pop %v392
    %v394 = vmul.f32 1.0, %v393
    %v395 = vadd.f32 %v385, %v179
    %397 = vrot.lane.b32.xlu0 %v395, 64
    %v398 = vpop.permute.xlu0 %397
    %v400 = vmul.f32 %v394, %v398
    %402 = vrot.lane.b32.xlu0 %v400, 64
    %v403 = vpop.permute.xlu0 %402
    %v405 = vadd.f32 %v315, %v403
    %v406 = vtanh.pop %v405
    %v407 = vsub.f32 1.0, %v394
    %409 = vrot.lane.b32.xlu0 %v406, 96
    %v410 = vpop.permute.xlu0 %409
    %v412 = vmul.f32 %v407, %v410
    %v413 = vmul.f32 %v394, %v309
    %v414 = vadd.f32 %v412, %v413
    %416 = vrot.lane.b32.xlu0 %v414, 96
    %v417 = vpop.permute.xlu0 %416
    %419 = vst.msk [vmem:[#allocation2 + $0x4] sm:$0x3] %vm208, %v417
    %v420 = vld [vmem:[#allocation3 + $0x6] sm:$0x3]
    %v421 = vsel %vm97, %v417, 0
    %423 = vmatprep.subr.mxu0 0.0
    %424 = vmatpush1.msra.mxu0 %v91
    %425 = vmatprep.subr.mxu0 0.0
    %426 = vmatpush1.msra.mxu0 %v92
    %427 = vmatprep.subr.mxu0 0.0
    %428 = vmatpush1.msra.mxu0 %v93
    %429 = vmatprep.subr.mxu0 0.0
    %430 = vmatpush1.msra.mxu0 %v94
    %431 = vmatprep.subr.mxu0 0.0
    %432 = vmatpush1.msra.mxu0 0.0
    %433 = vmatprep.subr.mxu0 0.0
    %434 = vmatpush1.msra.mxu0 0.0
    %435 = vmatprep.subr.mxu0 0.0
    %436 = vmatpush1.msra.mxu0 0.0
    %437 = vmatprep.subr.mxu0 0.0
    %438 = vmatpush1.msra.mxu0 0.0
    %439 = vmatprep.subr.mxu0 0.0
    %440 = vmatpush1.msra.mxu0 0.0
    %441 = vmatprep.subr.mxu0 0.0
    %442 = vmatpush1.msra.mxu0 0.0
    %443 = vmatprep.subr.mxu0 0.0
    %444 = vmatpush1.msra.mxu0 0.0
    %445 = vmatprep.subr.mxu0 0.0
    %446 = vmatpush1.msra.mxu0 0.0
    %447 = vmatprep.subr.mxu0 0.0
    %448 = vmatpush1.msra.mxu0 0.0
    %449 = vmatprep.subr.mxu0 0.0
    %450 = vmatpush1.msra.mxu0 0.0
    %451 = vmatprep.subr.mxu0 0.0
    %452 = vmatpush1.msra.mxu0 0.0
    %453 = vmatprep.subr.mxu0 0.0
    %454 = vmatpush1.msra.mxu0 0.0
    %455 = vmatprep.subr.mxu0 0.0
    %456 = vmatpush1.msra.mxu0 0.0
    %457 = vmatprep.subr.mxu0 0.0
    %458 = vmatpush1.msra.mxu0 0.0
    %459 = vmatprep.subr.mxu0 0.0
    %460 = vmatpush1.msra.mxu0 0.0
    %461 = vmatprep.subr.mxu0 0.0
    %462 = vmatpush1.msra.mxu0 0.0
    %463 = vmatprep.subr.mxu0 0.0
    %464 = vmatpush1.msra.mxu0 0.0
    %465 = vmatprep.subr.mxu0 0.0
    %466 = vmatpush1.msra.mxu0 0.0
    %467 = vmatprep.subr.mxu0 0.0
    %468 = vmatpush1.msra.mxu0 0.0
    %469 = vmatprep.subr.mxu0 0.0
    %470 = vmatpush1.msra.mxu0 0.0
    %471 = vmatprep.subr.mxu0 0.0
    %472 = vmatpush1.msra.mxu0 0.0
    %473 = vmatprep.subr.mxu0 0.0
    %474 = vmatpush1.msra.mxu0 0.0
    %475 = vmatprep.subr.mxu0 0.0
    %476 = vmatpush1.msra.mxu0 0.0
    %477 = vmatprep.subr.mxu0 0.0
    %478 = vmatpush1.msra.mxu0 0.0
    %479 = vmatprep.subr.mxu0 0.0
    %480 = vmatpush1.msra.mxu0 0.0
    %481 = vmatprep.subr.mxu0 0.0
    %482 = vmatpush1.msra.mxu0 0.0
    %483 = vmatprep.subr.mxu0 0.0
    %484 = vmatpush1.msra.mxu0 0.0
    %485 = vmatprep.subr.mxu0 0.0
    %486 = vmatpush1.msra.mxu0 0.0
    %487 = vmatprep.mubr.f32.mxu0 0.0
    %488 = vmatmul.mubr.f32.gmra.mrb[0].mxu0 %v421
    %v489 = vpop.f32.mrb[0].mxu0
    %v490 = vadd.f32 0.0, %v489
    %v491 = vpop.f32.mrb[0].mxu0
    %492 = vdwg.mxu0
    %v493 = vadd.f32 %v420, %v490
    %v494 = vxor.u32 %v493, 2147483648
    %v495 = vmul.f32 %v494, 1.442695
    %v496 = vpow.pop %v495
    %v497 = vadd.f32 %v496, 1.0
    %v498 = vrcp.pop %v497
    %v499 = vmul.f32 1.0, %v498
    %v500 = vadd.f32 %v490, %v179
    %502 = vrot.lane.b32.xlu0 %v500, 64
    %v503 = vpop.permute.xlu0 %502
    %v505 = vmul.f32 %v499, %v503
    %507 = vrot.lane.b32.xlu0 %v505, 64
    %v508 = vpop.permute.xlu0 %507
    %v510 = vadd.f32 %v420, %v508
    %v511 = vtanh.pop %v510
    %v512 = vsub.f32 1.0, %v499
    %514 = vrot.lane.b32.xlu0 %v511, 96
    %v515 = vpop.permute.xlu0 %514
    %v517 = vmul.f32 %v512, %v515
    %v518 = vmul.f32 %v499, %v414
    %v519 = vadd.f32 %v517, %v518
    %521 = vrot.lane.b32.xlu0 %v519, 96
    %v522 = vpop.permute.xlu0 %521
    %524 = vst.msk [vmem:[#allocation2 + $0x6] sm:$0x3] %vm208, %v522
    %v525 = vld [vmem:[#allocation3 + $0x8] sm:$0x3]
    %v526 = vsel %vm97, %v522, 0
    %528 = vmatprep.subr.mxu0 0.0
    %529 = vmatpush1.msra.mxu0 %v91
    %530 = vmatprep.subr.mxu0 0.0
    %531 = vmatpush1.msra.mxu0 %v92
    %532 = vmatprep.subr.mxu0 0.0
    %533 = vmatpush1.msra.mxu0 %v93
    %534 = vmatprep.subr.mxu0 0.0
    %535 = vmatpush1.msra.mxu0 %v94
    %536 = vmatprep.subr.mxu0 0.0
    %537 = vmatpush1.msra.mxu0 0.0
    %538 = vmatprep.subr.mxu0 0.0
    %539 = vmatpush1.msra.mxu0 0.0
    %540 = vmatprep.subr.mxu0 0.0
    %541 = vmatpush1.msra.mxu0 0.0
    %542 = vmatprep.subr.mxu0 0.0
    %543 = vmatpush1.msra.mxu0 0.0
    %544 = vmatprep.subr.mxu0 0.0
    %545 = vmatpush1.msra.mxu0 0.0
    %546 = vmatprep.subr.mxu0 0.0
    %547 = vmatpush1.msra.mxu0 0.0
    %548 = vmatprep.subr.mxu0 0.0
    %549 = vmatpush1.msra.mxu0 0.0
    %550 = vmatprep.subr.mxu0 0.0
    %551 = vmatpush1.msra.mxu0 0.0
    %552 = vmatprep.subr.mxu0 0.0
    %553 = vmatpush1.msra.mxu0 0.0
    %554 = vmatprep.subr.mxu0 0.0
    %555 = vmatpush1.msra.mxu0 0.0
    %556 = vmatprep.subr.mxu0 0.0
    %557 = vmatpush1.msra.mxu0 0.0
    %558 = vmatprep.subr.mxu0 0.0
    %559 = vmatpush1.msra.mxu0 0.0
    %560 = vmatprep.subr.mxu0 0.0
    %561 = vmatpush1.msra.mxu0 0.0
    %562 = vmatprep.subr.mxu0 0.0
    %563 = vmatpush1.msra.mxu0 0.0
    %564 = vmatprep.subr.mxu0 0.0
    %565 = vmatpush1.msra.mxu0 0.0
    %566 = vmatprep.subr.mxu0 0.0
    %567 = vmatpush1.msra.mxu0 0.0
    %568 = vmatprep.subr.mxu0 0.0
    %569 = vmatpush1.msra.mxu0 0.0
    %570 = vmatprep.subr.mxu0 0.0
    %571 = vmatpush1.msra.mxu0 0.0
    %572 = vmatprep.subr.mxu0 0.0
    %573 = vmatpush1.msra.mxu0 0.0
    %574 = vmatprep.subr.mxu0 0.0
    %575 = vmatpush1.msra.mxu0 0.0
    %576 = vmatprep.subr.mxu0 0.0
    %577 = vmatpush1.msra.mxu0 0.0
    %578 = vmatprep.subr.mxu0 0.0
    %579 = vmatpush1.msra.mxu0 0.0
    %580 = vmatprep.subr.mxu0 0.0
    %581 = vmatpush1.msra.mxu0 0.0
    %582 = vmatprep.subr.mxu0 0.0
    %583 = vmatpush1.msra.mxu0 0.0
    %584 = vmatprep.subr.mxu0 0.0
    %585 = vmatpush1.msra.mxu0 0.0
    %586 = vmatprep.subr.mxu0 0.0
    %587 = vmatpush1.msra.mxu0 0.0
    %588 = vmatprep.subr.mxu0 0.0
    %589 = vmatpush1.msra.mxu0 0.0
    %590 = vmatprep.subr.mxu0 0.0
    %591 = vmatpush1.msra.mxu0 0.0
    %592 = vmatprep.mubr.f32.mxu0 0.0
    %593 = vmatmul.mubr.f32.gmra.mrb[0].mxu0 %v526
    %v594 = vpop.f32.mrb[0].mxu0
    %v595 = vadd.f32 0.0, %v594
    %v596 = vpop.f32.mrb[0].mxu0
    %597 = vdwg.mxu0
    %v598 = vadd.f32 %v525, %v595
    %v599 = vxor.u32 %v598, 2147483648
    %v600 = vmul.f32 %v599, 1.442695
    %v601 = vpow.pop %v600
    %v602 = vadd.f32 %v601, 1.0
    %v603 = vrcp.pop %v602
    %v604 = vmul.f32 1.0, %v603
    %v605 = vadd.f32 %v595, %v179
    %607 = vrot.lane.b32.xlu0 %v605, 64
    %v608 = vpop.permute.xlu0 %607
    %v610 = vmul.f32 %v604, %v608
    %612 = vrot.lane.b32.xlu0 %v610, 64
    %v613 = vpop.permute.xlu0 %612
    %v615 = vadd.f32 %v525, %v613
    %v616 = vtanh.pop %v615
    %v617 = vsub.f32 1.0, %v604
    %619 = vrot.lane.b32.xlu0 %v616, 96
    %v620 = vpop.permute.xlu0 %619
    %v622 = vmul.f32 %v617, %v620
    %v623 = vmul.f32 %v604, %v519
    %v624 = vadd.f32 %v622, %v623
    %626 = vrot.lane.b32.xlu0 %v624, 96
    %v627 = vpop.permute.xlu0 %626
    %629 = vst.msk [vmem:[#allocation2 + $0x8] sm:$0x3] %vm208, %v627
    %v630 = vld [vmem:[#allocation3 + $0xa] sm:$0x3]
    %v631 = vsel %vm97, %v627, 0
    %633 = vmatprep.subr.mxu0 0.0
    %634 = vmatpush1.msra.mxu0 %v91
    %635 = vmatprep.subr.mxu0 0.0
    %636 = vmatpush1.msra.mxu0 %v92
    %637 = vmatprep.subr.mxu0 0.0
    %638 = vmatpush1.msra.mxu0 %v93
    %639 = vmatprep.subr.mxu0 0.0
    %640 = vmatpush1.msra.mxu0 %v94
    %641 = vmatprep.subr.mxu0 0.0
    %642 = vmatpush1.msra.mxu0 0.0
    %643 = vmatprep.subr.mxu0 0.0
    %644 = vmatpush1.msra.mxu0 0.0
    %645 = vmatprep.subr.mxu0 0.0
    %646 = vmatpush1.msra.mxu0 0.0
    %647 = vmatprep.subr.mxu0 0.0
    %648 = vmatpush1.msra.mxu0 0.0
    %649 = vmatprep.subr.mxu0 0.0
    %650 = vmatpush1.msra.mxu0 0.0
    %651 = vmatprep.subr.mxu0 0.0
    %652 = vmatpush1.msra.mxu0 0.0
    %653 = vmatprep.subr.mxu0 0.0
    %654 = vmatpush1.msra.mxu0 0.0
    %655 = vmatprep.subr.mxu0 0.0
    %656 = vmatpush1.msra.mxu0 0.0
    %657 = vmatprep.subr.mxu0 0.0
    %658 = vmatpush1.msra.mxu0 0.0
    %659 = vmatprep.subr.mxu0 0.0
    %660 = vmatpush1.msra.mxu0 0.0
    %661 = vmatprep.subr.mxu0 0.0
    %662 = vmatpush1.msra.mxu0 0.0
    %663 = vmatprep.subr.mxu0 0.0
    %664 = vmatpush1.msra.mxu0 0.0
    %665 = vmatprep.subr.mxu0 0.0
    %666 = vmatpush1.msra.mxu0 0.0
    %667 = vmatprep.subr.mxu0 0.0
    %668 = vmatpush1.msra.mxu0 0.0
    %669 = vmatprep.subr.mxu0 0.0
    %670 = vmatpush1.msra.mxu0 0.0
    %671 = vmatprep.subr.mxu0 0.0
    %672 = vmatpush1.msra.mxu0 0.0
    %673 = vmatprep.subr.mxu0 0.0
    %674 = vmatpush1.msra.mxu0 0.0
    %675 = vmatprep.subr.mxu0 0.0
    %676 = vmatpush1.msra.mxu0 0.0
    %677 = vmatprep.subr.mxu0 0.0
    %678 = vmatpush1.msra.mxu0 0.0
    %679 = vmatprep.subr.mxu0 0.0
    %680 = vmatpush1.msra.mxu0 0.0
    %681 = vmatprep.subr.mxu0 0.0
    %682 = vmatpush1.msra.mxu0 0.0
    %683 = vmatprep.subr.mxu0 0.0
    %684 = vmatpush1.msra.mxu0 0.0
    %685 = vmatprep.subr.mxu0 0.0
    %686 = vmatpush1.msra.mxu0 0.0
    %687 = vmatprep.subr.mxu0 0.0
    %688 = vmatpush1.msra.mxu0 0.0
    %689 = vmatprep.subr.mxu0 0.0
    %690 = vmatpush1.msra.mxu0 0.0
    %691 = vmatprep.subr.mxu0 0.0
    %692 = vmatpush1.msra.mxu0 0.0
    %693 = vmatprep.subr.mxu0 0.0
    %694 = vmatpush1.msra.mxu0 0.0
    %695 = vmatprep.subr.mxu0 0.0
    %696 = vmatpush1.msra.mxu0 0.0
    %697 = vmatprep.mubr.f32.mxu0 0.0
    %698 = vmatmul.mubr.f32.gmra.mrb[0].mxu0 %v631
    %v699 = vpop.f32.mrb[0].mxu0
    %v700 = vadd.f32 0.0, %v699
    %v701 = vpop.f32.mrb[0].mxu0
    %702 = vdwg.mxu0
    %v703 = vadd.f32 %v630, %v700
    %v704 = vxor.u32 %v703, 2147483648
    %v705 = vmul.f32 %v704, 1.442695
    %v706 = vpow.pop %v705
    %v707 = vadd.f32 %v706, 1.0
    %v708 = vrcp.pop %v707
    %v709 = vmul.f32 1.0, %v708
    %v710 = vadd.f32 %v700, %v179
    %712 = vrot.lane.b32.xlu0 %v710, 64
    %v713 = vpop.permute.xlu0 %712
    %v715 = vmul.f32 %v709, %v713
    %717 = vrot.lane.b32.xlu0 %v715, 64
    %v718 = vpop.permute.xlu0 %717
    %v720 = vadd.f32 %v630, %v718
    %v721 = vtanh.pop %v720
    %v722 = vsub.f32 1.0, %v709
    %724 = vrot.lane.b32.xlu0 %v721, 96
    %v725 = vpop.permute.xlu0 %724
    %v727 = vmul.f32 %v722, %v725
    %v728 = vmul.f32 %v709, %v624
    %v729 = vadd.f32 %v727, %v728
    %731 = vrot.lane.b32.xlu0 %v729, 96
    %v732 = vpop.permute.xlu0 %731
    %734 = vst.msk [vmem:[#allocation2 + $0xa] sm:$0x3] %vm208, %v732
    %v735 = vld [vmem:[#allocation3 + $0xc] sm:$0x3]
    %v736 = vsel %vm97, %v732, 0
    %738 = vmatprep.subr.mxu0 0.0
    %739 = vmatpush1.msra.mxu0 %v91
    %740 = vmatprep.subr.mxu0 0.0
    %741 = vmatpush1.msra.mxu0 %v92
    %742 = vmatprep.subr.mxu0 0.0
    %743 = vmatpush1.msra.mxu0 %v93
    %744 = vmatprep.subr.mxu0 0.0
    %745 = vmatpush1.msra.mxu0 %v94
    %746 = vmatprep.subr.mxu0 0.0
    %747 = vmatpush1.msra.mxu0 0.0
    %748 = vmatprep.subr.mxu0 0.0
    %749 = vmatpush1.msra.mxu0 0.0
    %750 = vmatprep.subr.mxu0 0.0
    %751 = vmatpush1.msra.mxu0 0.0
    %752 = vmatprep.subr.mxu0 0.0
    %753 = vmatpush1.msra.mxu0 0.0
    %754 = vmatprep.subr.mxu0 0.0
    %755 = vmatpush1.msra.mxu0 0.0
    %756 = vmatprep.subr.mxu0 0.0
    %757 = vmatpush1.msra.mxu0 0.0
    %758 = vmatprep.subr.mxu0 0.0
    %759 = vmatpush1.msra.mxu0 0.0
    %760 = vmatprep.subr.mxu0 0.0
    %761 = vmatpush1.msra.mxu0 0.0
    %762 = vmatprep.subr.mxu0 0.0
    %763 = vmatpush1.msra.mxu0 0.0
    %764 = vmatprep.subr.mxu0 0.0
    %765 = vmatpush1.msra.mxu0 0.0
    %766 = vmatprep.subr.mxu0 0.0
    %767 = vmatpush1.msra.mxu0 0.0
    %768 = vmatprep.subr.mxu0 0.0
    %769 = vmatpush1.msra.mxu0 0.0
    %770 = vmatprep.subr.mxu0 0.0
    %771 = vmatpush1.msra.mxu0 0.0
    %772 = vmatprep.subr.mxu0 0.0
    %773 = vmatpush1.msra.mxu0 0.0
    %774 = vmatprep.subr.mxu0 0.0
    %775 = vmatpush1.msra.mxu0 0.0
    %776 = vmatprep.subr.mxu0 0.0
    %777 = vmatpush1.msra.mxu0 0.0
    %778 = vmatprep.subr.mxu0 0.0
    %779 = vmatpush1.msra.mxu0 0.0
    %780 = vmatprep.subr.mxu0 0.0
    %781 = vmatpush1.msra.mxu0 0.0
    %782 = vmatprep.subr.mxu0 0.0
    %783 = vmatpush1.msra.mxu0 0.0
    %784 = vmatprep.subr.mxu0 0.0
    %785 = vmatpush1.msra.mxu0 0.0
    %786 = vmatprep.subr.mxu0 0.0
    %787 = vmatpush1.msra.mxu0 0.0
    %788 = vmatprep.subr.mxu0 0.0
    %789 = vmatpush1.msra.mxu0 0.0
    %790 = vmatprep.subr.mxu0 0.0
    %791 = vmatpush1.msra.mxu0 0.0
    %792 = vmatprep.subr.mxu0 0.0
    %793 = vmatpush1.msra.mxu0 0.0
    %794 = vmatprep.subr.mxu0 0.0
    %795 = vmatpush1.msra.mxu0 0.0
    %796 = vmatprep.subr.mxu0 0.0
    %797 = vmatpush1.msra.mxu0 0.0
    %798 = vmatprep.subr.mxu0 0.0
    %799 = vmatpush1.msra.mxu0 0.0
    %800 = vmatprep.subr.mxu0 0.0
    %801 = vmatpush1.msra.mxu0 0.0
    %802 = vmatprep.mubr.f32.mxu0 0.0
    %803 = vmatmul.mubr.f32.gmra.mrb[0].mxu0 %v736
    %v804 = vpop.f32.mrb[0].mxu0
    %v805 = vadd.f32 0.0, %v804
    %v806 = vpop.f32.mrb[0].mxu0
    %807 = vdwg.mxu0
    %v808 = vadd.f32 %v735, %v805
    %v809 = vxor.u32 %v808, 2147483648
    %v810 = vmul.f32 %v809, 1.442695
    %v811 = vpow.pop %v810
    %v812 = vadd.f32 %v811, 1.0
    %v813 = vrcp.pop %v812
    %v814 = vmul.f32 1.0, %v813
    %v815 = vadd.f32 %v805, %v179
    %817 = vrot.lane.b32.xlu0 %v815, 64
    %v818 = vpop.permute.xlu0 %817
    %v820 = vmul.f32 %v814, %v818
    %822 = vrot.lane.b32.xlu0 %v820, 64
    %v823 = vpop.permute.xlu0 %822
    %v825 = vadd.f32 %v735, %v823
    %v826 = vtanh.pop %v825
    %v827 = vsub.f32 1.0, %v814
    %829 = vrot.lane.b32.xlu0 %v826, 96
    %v830 = vpop.permute.xlu0 %829
    %v832 = vmul.f32 %v827, %v830
    %v833 = vmul.f32 %v814, %v729
    %v834 = vadd.f32 %v832, %v833
    %836 = vrot.lane.b32.xlu0 %v834, 96
    %v837 = vpop.permute.xlu0 %836
    %839 = vst.msk [vmem:[#allocation2 + $0xc] sm:$0x3] %vm208, %v837
    %v840 = vld [vmem:[#allocation3 + $0xe] sm:$0x3]
    %v841 = vsel %vm97, %v837, 0
    %843 = vmatprep.subr.mxu0 0.0
    %844 = vmatpush1.msra.mxu0 %v91
    %845 = vmatprep.subr.mxu0 0.0
    %846 = vmatpush1.msra.mxu0 %v92
    %847 = vmatprep.subr.mxu0 0.0
    %848 = vmatpush1.msra.mxu0 %v93
    %849 = vmatprep.subr.mxu0 0.0
    %850 = vmatpush1.msra.mxu0 %v94
    %851 = vmatprep.subr.mxu0 0.0
    %852 = vmatpush1.msra.mxu0 0.0
    %853 = vmatprep.subr.mxu0 0.0
    %854 = vmatpush1.msra.mxu0 0.0
    %855 = vmatprep.subr.mxu0 0.0
    %856 = vmatpush1.msra.mxu0 0.0
    %857 = vmatprep.subr.mxu0 0.0
    %858 = vmatpush1.msra.mxu0 0.0
    %859 = vmatprep.subr.mxu0 0.0
    %860 = vmatpush1.msra.mxu0 0.0
    %861 = vmatprep.subr.mxu0 0.0
    %862 = vmatpush1.msra.mxu0 0.0
    %863 = vmatprep.subr.mxu0 0.0
    %864 = vmatpush1.msra.mxu0 0.0
    %865 = vmatprep.subr.mxu0 0.0
    %866 = vmatpush1.msra.mxu0 0.0
    %867 = vmatprep.subr.mxu0 0.0
    %868 = vmatpush1.msra.mxu0 0.0
    %869 = vmatprep.subr.mxu0 0.0
    %870 = vmatpush1.msra.mxu0 0.0
    %871 = vmatprep.subr.mxu0 0.0
    %872 = vmatpush1.msra.mxu0 0.0
    %873 = vmatprep.subr.mxu0 0.0
    %874 = vmatpush1.msra.mxu0 0.0
    %875 = vmatprep.subr.mxu0 0.0
    %876 = vmatpush1.msra.mxu0 0.0
    %877 = vmatprep.subr.mxu0 0.0
    %878 = vmatpush1.msra.mxu0 0.0
    %879 = vmatprep.subr.mxu0 0.0
    %880 = vmatpush1.msra.mxu0 0.0
    %881 = vmatprep.subr.mxu0 0.0
    %882 = vmatpush1.msra.mxu0 0.0
    %883 = vmatprep.subr.mxu0 0.0
    %884 = vmatpush1.msra.mxu0 0.0
    %885 = vmatprep.subr.mxu0 0.0
    %886 = vmatpush1.msra.mxu0 0.0
    %887 = vmatprep.subr.mxu0 0.0
    %888 = vmatpush1.msra.mxu0 0.0
    %889 = vmatprep.subr.mxu0 0.0
    %890 = vmatpush1.msra.mxu0 0.0
    %891 = vmatprep.subr.mxu0 0.0
    %892 = vmatpush1.msra.mxu0 0.0
    %893 = vmatprep.subr.mxu0 0.0
    %894 = vmatpush1.msra.mxu0 0.0
    %895 = vmatprep.subr.mxu0 0.0
    %896 = vmatpush1.msra.mxu0 0.0
    %897 = vmatprep.subr.mxu0 0.0
    %898 = vmatpush1.msra.mxu0 0.0
    %899 = vmatprep.subr.mxu0 0.0
    %900 = vmatpush1.msra.mxu0 0.0
    %901 = vmatprep.subr.mxu0 0.0
    %902 = vmatpush1.msra.mxu0 0.0
    %903 = vmatprep.subr.mxu0 0.0
    %904 = vmatpush1.msra.mxu0 0.0
    %905 = vmatprep.subr.mxu0 0.0
    %906 = vmatpush1.msra.mxu0 0.0
    %907 = vmatprep.mubr.f32.mxu0 0.0
    %908 = vmatmul.mubr.f32.gmra.mrb[0].mxu0 %v841
    %v909 = vpop.f32.mrb[0].mxu0
    %v910 = vadd.f32 0.0, %v909
    %v911 = vpop.f32.mrb[0].mxu0
    %912 = vdwg.mxu0
    %v913 = vadd.f32 %v840, %v910
    %v914 = vxor.u32 %v913, 2147483648
    %v915 = vmul.f32 %v914, 1.442695
    %v916 = vpow.pop %v915
    %v917 = vadd.f32 %v916, 1.0
    %v918 = vrcp.pop %v917
    %v919 = vmul.f32 1.0, %v918
    %v920 = vadd.f32 %v910, %v179
    %922 = vrot.lane.b32.xlu0 %v920, 64
    %v923 = vpop.permute.xlu0 %922
    %v925 = vmul.f32 %v919, %v923
    %927 = vrot.lane.b32.xlu0 %v925, 64
    %v928 = vpop.permute.xlu0 %927
    %v930 = vadd.f32 %v840, %v928
    %v931 = vtanh.pop %v930
    %v932 = vsub.f32 1.0, %v919
    %934 = vrot.lane.b32.xlu0 %v931, 96
    %v935 = vpop.permute.xlu0 %934
    %v937 = vmul.f32 %v932, %v935
    %v938 = vmul.f32 %v919, %v834
    %v939 = vadd.f32 %v937, %v938
    %941 = vrot.lane.b32.xlu0 %v939, 96
    %v942 = vpop.permute.xlu0 %941
    %944 = vst.msk [vmem:[#allocation2 + $0xe] sm:$0x3] %vm208, %v942
    %v945 = vld [vmem:[#allocation2] sm:$0xff]
    %v946 = vld [vmem:[#allocation2 + $0x8] sm:$0xff]
    %v947 = vld [vmem:[#allocation6] sm:$0xff]
    %v948 = vld [vmem:[#allocation6 + $0x8] sm:$0xff]
    %v949 = vld [vmem:[#allocation6 + $0x10] sm:$0xff]
    %v950 = vld [vmem:[#allocation6 + $0x18] sm:$0xff]
    %v952 = vlaneseq
    %v953 = vshrl.u32 %v952, 7
    %v954 = vsub.s32 0, %v953
    %v955 = vrot.slane %v58, %v954
    %v958 = vsel %vm97, %v945, 0
    %v961 = vsel %vm97, %v946, 0
    %963 = vmatprep.subr.mxu0 0.0
    %964 = vmatpush1.msra.mxu0 %v947
    %965 = vmatprep.subr.mxu0 0.0
    %966 = vmatpush1.msra.mxu0 %v948
    %967 = vmatprep.subr.mxu0 0.0
    %968 = vmatpush1.msra.mxu0 %v949
    %969 = vmatprep.subr.mxu0 0.0
    %970 = vmatpush1.msra.mxu0 %v950
    %971 = vmatprep.subr.mxu0 0.0
    %972 = vmatpush1.msra.mxu0 0.0
    %973 = vmatprep.subr.mxu0 0.0
    %974 = vmatpush1.msra.mxu0 0.0
    %975 = vmatprep.subr.mxu0 0.0
    %976 = vmatpush1.msra.mxu0 0.0
    %977 = vmatprep.subr.mxu0 0.0
    %978 = vmatpush1.msra.mxu0 0.0
    %979 = vmatprep.subr.mxu0 0.0
    %980 = vmatpush1.msra.mxu0 0.0
    %981 = vmatprep.subr.mxu0 0.0
    %982 = vmatpush1.msra.mxu0 0.0
    %983 = vmatprep.subr.mxu0 0.0
    %984 = vmatpush1.msra.mxu0 0.0
    %985 = vmatprep.subr.mxu0 0.0
    %986 = vmatpush1.msra.mxu0 0.0
    %987 = vmatprep.subr.mxu0 0.0
    %988 = vmatpush1.msra.mxu0 0.0
    %989 = vmatprep.subr.mxu0 0.0
    %990 = vmatpush1.msra.mxu0 0.0
    %991 = vmatprep.subr.mxu0 0.0
    %992 = vmatpush1.msra.mxu0 0.0
    %993 = vmatprep.subr.mxu0 0.0
    %994 = vmatpush1.msra.mxu0 0.0
    %995 = vmatprep.subr.mxu0 0.0
    %996 = vmatpush1.msra.mxu0 0.0
    %997 = vmatprep.subr.mxu0 0.0
    %998 = vmatpush1.msra.mxu0 0.0
    %999 = vmatprep.subr.mxu0 0.0
    %1000 = vmatpush1.msra.mxu0 0.0
    %1001 = vmatprep.subr.mxu0 0.0
    %1002 = vmatpush1.msra.mxu0 0.0
    %1003 = vmatprep.subr.mxu0 0.0
    %1004 = vmatpush1.msra.mxu0 0.0
    %1005 = vmatprep.subr.mxu0 0.0
    %1006 = vmatpush1.msra.mxu0 0.0
    %1007 = vmatprep.subr.mxu0 0.0
    %1008 = vmatpush1.msra.mxu0 0.0
    %1009 = vmatprep.subr.mxu0 0.0
    %1010 = vmatpush1.msra.mxu0 0.0
    %1011 = vmatprep.subr.mxu0 0.0
    %1012 = vmatpush1.msra.mxu0 0.0
    %1013 = vmatprep.subr.mxu0 0.0
    %1014 = vmatpush1.msra.mxu0 0.0
    %1015 = vmatprep.subr.mxu0 0.0
    %1016 = vmatpush1.msra.mxu0 0.0
    %1017 = vmatprep.subr.mxu0 0.0
    %1018 = vmatpush1.msra.mxu0 0.0
    %1019 = vmatprep.subr.mxu0 0.0
    %1020 = vmatpush1.msra.mxu0 0.0
    %1021 = vmatprep.subr.mxu0 0.0
    %1022 = vmatpush1.msra.mxu0 0.0
    %1023 = vmatprep.subr.mxu0 0.0
    %1024 = vmatpush1.msra.mxu0 0.0
    %1025 = vmatprep.subr.mxu0 0.0
    %1026 = vmatpush1.msra.mxu0 0.0
    %1027 = vmatprep.mubr.f32.mxu0 0.0
    %1028 = vmatmul.mubr.f32.gmra.mrb[0].mxu0 %v958
    %v1029 = vpop.f32.mrb[0].mxu0
    %v1030 = vadd.f32 %v955, %v1029
    %v1031 = vpop.f32.mrb[0].mxu0
    %1032 = vmatprep.mubr.f32.mxu0 0.0
    %1033 = vmatmul.mubr.f32.gmra.mrb[0].mxu0 %v961
    %v1034 = vpop.f32.mrb[0].mxu0
    %v1035 = vadd.f32 %v955, %v1034
    %v1036 = vpop.f32.mrb[0].mxu0
    %1037 = vdwg.mxu0
    %1038 = vst.msk [vmem:[#allocation3] sm:$0xff] %vm88, %v1030
    %1039 = vst.msk [vmem:[#allocation3 + $0x8] sm:$0xff] %vm88, %v1035
    %s1040 = scalar_lea.vmem %s4, 32
    %v1041 = vld [vmem:[%s1040] sm:$0xff]
    %v1042 = vld [vmem:[%s1040 + $0x8] sm:$0xff]
    %v1043 = vld [vmem:[%s1040 + $0x10] sm:$0xff]
    %v1044 = vld [vmem:[%s1040 + $0x18] sm:$0xff]
    %s1045 = scalar_lea.vmem [#allocation4], 2
    %v1046 = vld [vmem:[%s1045] sm:$0x3]
    %v1047 = vld [vmem:[#allocation3] sm:$0x3]
    %v1049 = vsel %vm97, %v1046, 0
    %1051 = vmatprep.subr.mxu0 0.0
    %1052 = vmatpush1.msra.mxu0 %v1041
    %1053 = vmatprep.subr.mxu0 0.0
    %1054 = vmatpush1.msra.mxu0 %v1042
    %1055 = vmatprep.subr.mxu0 0.0
    %1056 = vmatpush1.msra.mxu0 %v1043
    %1057 = vmatprep.subr.mxu0 0.0
    %1058 = vmatpush1.msra.mxu0 %v1044
    %1059 = vmatprep.subr.mxu0 0.0
    %1060 = vmatpush1.msra.mxu0 0.0
    %1061 = vmatprep.subr.mxu0 0.0
    %1062 = vmatpush1.msra.mxu0 0.0
    %1063 = vmatprep.subr.mxu0 0.0
    %1064 = vmatpush1.msra.mxu0 0.0
    %1065 = vmatprep.subr.mxu0 0.0
    %1066 = vmatpush1.msra.mxu0 0.0
    %1067 = vmatprep.subr.mxu0 0.0
    %1068 = vmatpush1.msra.mxu0 0.0
    %1069 = vmatprep.subr.mxu0 0.0
    %1070 = vmatpush1.msra.mxu0 0.0
    %1071 = vmatprep.subr.mxu0 0.0
    %1072 = vmatpush1.msra.mxu0 0.0
    %1073 = vmatprep.subr.mxu0 0.0
    %1074 = vmatpush1.msra.mxu0 0.0
    %1075 = vmatprep.subr.mxu0 0.0
    %1076 = vmatpush1.msra.mxu0 0.0
    %1077 = vmatprep.subr.mxu0 0.0
    %1078 = vmatpush1.msra.mxu0 0.0
    %1079 = vmatprep.subr.mxu0 0.0
    %1080 = vmatpush1.msra.mxu0 0.0
    %1081 = vmatprep.subr.mxu0 0.0
    %1082 = vmatpush1.msra.mxu0 0.0
    %1083 = vmatprep.subr.mxu0 0.0
    %1084 = vmatpush1.msra.mxu0 0.0
    %1085 = vmatprep.subr.mxu0 0.0
    %1086 = vmatpush1.msra.mxu0 0.0
    %1087 = vmatprep.subr.mxu0 0.0
    %1088 = vmatpush1.msra.mxu0 0.0
    %1089 = vmatprep.subr.mxu0 0.0
    %1090 = vmatpush1.msra.mxu0 0.0
    %1091 = vmatprep.subr.mxu0 0.0
    %1092 = vmatpush1.msra.mxu0 0.0
    %1093 = vmatprep.subr.mxu0 0.0
    %1094 = vmatpush1.msra.mxu0 0.0
    %1095 = vmatprep.subr.mxu0 0.0
    %1096 = vmatpush1.msra.mxu0 0.0
    %1097 = vmatprep.subr.mxu0 0.0
    %1098 = vmatpush1.msra.mxu0 0.0
    %1099 = vmatprep.subr.mxu0 0.0
    %1100 = vmatpush1.msra.mxu0 0.0
    %1101 = vmatprep.subr.mxu0 0.0
    %1102 = vmatpush1.msra.mxu0 0.0
    %1103 = vmatprep.subr.mxu0 0.0
    %1104 = vmatpush1.msra.mxu0 0.0
    %1105 = vmatprep.subr.mxu0 0.0
    %1106 = vmatpush1.msra.mxu0 0.0
    %1107 = vmatprep.subr.mxu0 0.0
    %1108 = vmatpush1.msra.mxu0 0.0
    %1109 = vmatprep.subr.mxu0 0.0
    %1110 = vmatpush1.msra.mxu0 0.0
    %1111 = vmatprep.subr.mxu0 0.0
    %1112 = vmatpush1.msra.mxu0 0.0
    %1113 = vmatprep.subr.mxu0 0.0
    %1114 = vmatpush1.msra.mxu0 0.0
    %1115 = vmatprep.mubr.f32.mxu0 0.0
    %1116 = vmatmul.mubr.f32.gmra.mrb[0].mxu0 %v1049
    %v1117 = vpop.f32.mrb[0].mxu0
    %v1118 = vadd.f32 0.0, %v1117
    %v1119 = vpop.f32.mrb[0].mxu0
    %1120 = vdwg.mxu0
    %v1121 = vadd.f32 %v1047, %v1118
    %v1122 = vxor.u32 %v1121, 2147483648
    %v1123 = vmul.f32 %v1122, 1.442695
    %v1124 = vpow.pop %v1123
    %v1125 = vadd.f32 %v1124, 1.0
    %v1126 = vrcp.pop %v1125
    %v1127 = vmul.f32 1.0, %v1126
    %1128 = vrot.lane.b32.xlu0 %v955, 96
    %v1129 = vpop.permute.xlu0 %1128
    %v1131 = vadd.f32 %v1118, %v1129
    %1133 = vrot.lane.b32.xlu0 %v1131, 64
    %v1134 = vpop.permute.xlu0 %1133
    %v1136 = vmul.f32 %v1127, %v1134
    %1138 = vrot.lane.b32.xlu0 %v1136, 64
    %v1139 = vpop.permute.xlu0 %1138
    %v1141 = vadd.f32 %v1047, %v1139
    %v1142 = vtanh.pop %v1141
    %v1143 = vsub.f32 1.0, %v1127
    %1145 = vrot.lane.b32.xlu0 %v1142, 96
    %v1146 = vpop.permute.xlu0 %1145
    %v1148 = vmul.f32 %v1143, %v1146
    %1149 = vrot.lane.b32.xlu0 %v1046, 32
    %v1150 = vpop.permute.xlu0 %1149
    %v1152 = vmul.f32 %v1127, %v1150
    %v1153 = vadd.f32 %v1148, %v1152
    %1155 = vrot.lane.b32.xlu0 %v1153, 96
    %v1156 = vpop.permute.xlu0 %1155
    %1158 = vst.msk [vmem:[#allocation2] sm:$0x3] %vm208, %v1156
    %v1159 = vld [vmem:[#allocation3 + $0x2] sm:$0x3]
    %v1160 = vsel %vm97, %v1156, 0
    %1162 = vmatprep.subr.mxu0 0.0
    %1163 = vmatpush1.msra.mxu0 %v1041
    %1164 = vmatprep.subr.mxu0 0.0
    %1165 = vmatpush1.msra.mxu0 %v1042
    %1166 = vmatprep.subr.mxu0 0.0
    %1167 = vmatpush1.msra.mxu0 %v1043
    %1168 = vmatprep.subr.mxu0 0.0
    %1169 = vmatpush1.msra.mxu0 %v1044
    %1170 = vmatprep.subr.mxu0 0.0
    %1171 = vmatpush1.msra.mxu0 0.0
    %1172 = vmatprep.subr.mxu0 0.0
    %1173 = vmatpush1.msra.mxu0 0.0
    %1174 = vmatprep.subr.mxu0 0.0
    %1175 = vmatpush1.msra.mxu0 0.0
    %1176 = vmatprep.subr.mxu0 0.0
    %1177 = vmatpush1.msra.mxu0 0.0
    %1178 = vmatprep.subr.mxu0 0.0
    %1179 = vmatpush1.msra.mxu0 0.0
    %1180 = vmatprep.subr.mxu0 0.0
    %1181 = vmatpush1.msra.mxu0 0.0
    %1182 = vmatprep.subr.mxu0 0.0
    %1183 = vmatpush1.msra.mxu0 0.0
    %1184 = vmatprep.subr.mxu0 0.0
    %1185 = vmatpush1.msra.mxu0 0.0
    %1186 = vmatprep.subr.mxu0 0.0
    %1187 = vmatpush1.msra.mxu0 0.0
    %1188 = vmatprep.subr.mxu0 0.0
    %1189 = vmatpush1.msra.mxu0 0.0
    %1190 = vmatprep.subr.mxu0 0.0
    %1191 = vmatpush1.msra.mxu0 0.0
    %1192 = vmatprep.subr.mxu0 0.0
    %1193 = vmatpush1.msra.mxu0 0.0
    %1194 = vmatprep.subr.mxu0 0.0
    %1195 = vmatpush1.msra.mxu0 0.0
    %1196 = vmatprep.subr.mxu0 0.0
    %1197 = vmatpush1.msra.mxu0 0.0
    %1198 = vmatprep.subr.mxu0 0.0
    %1199 = vmatpush1.msra.mxu0 0.0
    %1200 = vmatprep.subr.mxu0 0.0
    %1201 = vmatpush1.msra.mxu0 0.0
    %1202 = vmatprep.subr.mxu0 0.0
    %1203 = vmatpush1.msra.mxu0 0.0
    %1204 = vmatprep.subr.mxu0 0.0
    %1205 = vmatpush1.msra.mxu0 0.0
    %1206 = vmatprep.subr.mxu0 0.0
    %1207 = vmatpush1.msra.mxu0 0.0
    %1208 = vmatprep.subr.mxu0 0.0
    %1209 = vmatpush1.msra.mxu0 0.0
    %1210 = vmatprep.subr.mxu0 0.0
    %1211 = vmatpush1.msra.mxu0 0.0
    %1212 = vmatprep.subr.mxu0 0.0
    %1213 = vmatpush1.msra.mxu0 0.0
    %1214 = vmatprep.subr.mxu0 0.0
    %1215 = vmatpush1.msra.mxu0 0.0
    %1216 = vmatprep.subr.mxu0 0.0
    %1217 = vmatpush1.msra.mxu0 0.0
    %1218 = vmatprep.subr.mxu0 0.0
    %1219 = vmatpush1.msra.mxu0 0.0
    %1220 = vmatprep.subr.mxu0 0.0
    %1221 = vmatpush1.msra.mxu0 0.0
    %1222 = vmatprep.subr.mxu0 0.0
    %1223 = vmatpush1.msra.mxu0 0.0
    %1224 = vmatprep.subr.mxu0 0.0
    %1225 = vmatpush1.msra.mxu0 0.0
    %1226 = vmatprep.mubr.f32.mxu0 0.0
    %1227 = vmatmul.mubr.f32.gmra.mrb[0].mxu0 %v1160
    %v1228 = vpop.f32.mrb[0].mxu0
    %v1229 = vadd.f32 0.0, %v1228
    %v1230 = vpop.f32.mrb[0].mxu0
    %1231 = vdwg.mxu0
    %v1232 = vadd.f32 %v1159, %v1229
    %v1233 = vxor.u32 %v1232, 2147483648
    %v1234 = vmul.f32 %v1233, 1.442695
    %v1235 = vpow.pop %v1234
    %v1236 = vadd.f32 %v1235, 1.0
    %v1237 = vrcp.pop %v1236
    %v1238 = vmul.f32 1.0, %v1237
    %v1239 = vadd.f32 %v1229, %v1129
    %1241 = vrot.lane.b32.xlu0 %v1239, 64
    %v1242 = vpop.permute.xlu0 %1241
    %v1244 = vmul.f32 %v1238, %v1242
    %1246 = vrot.lane.b32.xlu0 %v1244, 64
    %v1247 = vpop.permute.xlu0 %1246
    %v1249 = vadd.f32 %v1159, %v1247
    %v1250 = vtanh.pop %v1249
    %v1251 = vsub.f32 1.0, %v1238
    %1253 = vrot.lane.b32.xlu0 %v1250, 96
    %v1254 = vpop.permute.xlu0 %1253
    %v1256 = vmul.f32 %v1251, %v1254
    %v1257 = vmul.f32 %v1238, %v1153
    %v1258 = vadd.f32 %v1256, %v1257
    %1260 = vrot.lane.b32.xlu0 %v1258, 96
    %v1261 = vpop.permute.xlu0 %1260
    %1263 = vst.msk [vmem:[#allocation2 + $0x2] sm:$0x3] %vm208, %v1261
    %v1264 = vld [vmem:[#allocation3 + $0x4] sm:$0x3]
    %v1265 = vsel %vm97, %v1261, 0
    %1267 = vmatprep.subr.mxu0 0.0
    %1268 = vmatpush1.msra.mxu0 %v1041
    %1269 = vmatprep.subr.mxu0 0.0
    %1270 = vmatpush1.msra.mxu0 %v1042
    %1271 = vmatprep.subr.mxu0 0.0
    %1272 = vmatpush1.msra.mxu0 %v1043
    %1273 = vmatprep.subr.mxu0 0.0
    %1274 = vmatpush1.msra.mxu0 %v1044
    %1275 = vmatprep.subr.mxu0 0.0
    %1276 = vmatpush1.msra.mxu0 0.0
    %1277 = vmatprep.subr.mxu0 0.0
    %1278 = vmatpush1.msra.mxu0 0.0
    %1279 = vmatprep.subr.mxu0 0.0
    %1280 = vmatpush1.msra.mxu0 0.0
    %1281 = vmatprep.subr.mxu0 0.0
    %1282 = vmatpush1.msra.mxu0 0.0
    %1283 = vmatprep.subr.mxu0 0.0
    %1284 = vmatpush1.msra.mxu0 0.0
    %1285 = vmatprep.subr.mxu0 0.0
    %1286 = vmatpush1.msra.mxu0 0.0
    %1287 = vmatprep.subr.mxu0 0.0
    %1288 = vmatpush1.msra.mxu0 0.0
    %1289 = vmatprep.subr.mxu0 0.0
    %1290 = vmatpush1.msra.mxu0 0.0
    %1291 = vmatprep.subr.mxu0 0.0
    %1292 = vmatpush1.msra.mxu0 0.0
    %1293 = vmatprep.subr.mxu0 0.0
    %1294 = vmatpush1.msra.mxu0 0.0
    %1295 = vmatprep.subr.mxu0 0.0
    %1296 = vmatpush1.msra.mxu0 0.0
    %1297 = vmatprep.subr.mxu0 0.0
    %1298 = vmatpush1.msra.mxu0 0.0
    %1299 = vmatprep.subr.mxu0 0.0
    %1300 = vmatpush1.msra.mxu0 0.0
    %1301 = vmatprep.subr.mxu0 0.0
    %1302 = vmatpush1.msra.mxu0 0.0
    %1303 = vmatprep.subr.mxu0 0.0
    %1304 = vmatpush1.msra.mxu0 0.0
    %1305 = vmatprep.subr.mxu0 0.0
    %1306 = vmatpush1.msra.mxu0 0.0
    %1307 = vmatprep.subr.mxu0 0.0
    %1308 = vmatpush1.msra.mxu0 0.0
    %1309 = vmatprep.subr.mxu0 0.0
    %1310 = vmatpush1.msra.mxu0 0.0
    %1311 = vmatprep.subr.mxu0 0.0
    %1312 = vmatpush1.msra.mxu0 0.0
    %1313 = vmatprep.subr.mxu0 0.0
    %1314 = vmatpush1.msra.mxu0 0.0
    %1315 = vmatprep.subr.mxu0 0.0
    %1316 = vmatpush1.msra.mxu0 0.0
    %1317 = vmatprep.subr.mxu0 0.0
    %1318 = vmatpush1.msra.mxu0 0.0
    %1319 = vmatprep.subr.mxu0 0.0
    %1320 = vmatpush1.msra.mxu0 0.0
    %1321 = vmatprep.subr.mxu0 0.0
    %1322 = vmatpush1.msra.mxu0 0.0
    %1323 = vmatprep.subr.mxu0 0.0
    %1324 = vmatpush1.msra.mxu0 0.0
    %1325 = vmatprep.subr.mxu0 0.0
    %1326 = vmatpush1.msra.mxu0 0.0
    %1327 = vmatprep.subr.mxu0 0.0
    %1328 = vmatpush1.msra.mxu0 0.0
    %1329 = vmatprep.subr.mxu0 0.0
    %1330 = vmatpush1.msra.mxu0 0.0
    %1331 = vmatprep.mubr.f32.mxu0 0.0
    %1332 = vmatmul.mubr.f32.gmra.mrb[0].mxu0 %v1265
    %v1333 = vpop.f32.mrb[0].mxu0
    %v1334 = vadd.f32 0.0, %v1333
    %v1335 = vpop.f32.mrb[0].mxu0
    %1336 = vdwg.mxu0
    %v1337 = vadd.f32 %v1264, %v1334
    %v1338 = vxor.u32 %v1337, 2147483648
    %v1339 = vmul.f32 %v1338, 1.442695
    %v1340 = vpow.pop %v1339
    %v1341 = vadd.f32 %v1340, 1.0
    %v1342 = vrcp.pop %v1341
    %v1343 = vmul.f32 1.0, %v1342
    %v1344 = vadd.f32 %v1334, %v1129
    %1346 = vrot.lane.b32.xlu0 %v1344, 64
    %v1347 = vpop.permute.xlu0 %1346
    %v1349 = vmul.f32 %v1343, %v1347
    %1351 = vrot.lane.b32.xlu0 %v1349, 64
    %v1352 = vpop.permute.xlu0 %1351
    %v1354 = vadd.f32 %v1264, %v1352
    %v1355 = vtanh.pop %v1354
    %v1356 = vsub.f32 1.0, %v1343
    %1358 = vrot.lane.b32.xlu0 %v1355, 96
    %v1359 = vpop.permute.xlu0 %1358
    %v1361 = vmul.f32 %v1356, %v1359
    %v1362 = vmul.f32 %v1343, %v1258
    %v1363 = vadd.f32 %v1361, %v1362
    %1365 = vrot.lane.b32.xlu0 %v1363, 96
    %v1366 = vpop.permute.xlu0 %1365
    %1368 = vst.msk [vmem:[#allocation2 + $0x4] sm:$0x3] %vm208, %v1366
    %v1369 = vld [vmem:[#allocation3 + $0x6] sm:$0x3]
    %v1370 = vsel %vm97, %v1366, 0
    %1372 = vmatprep.subr.mxu0 0.0
    %1373 = vmatpush1.msra.mxu0 %v1041
    %1374 = vmatprep.subr.mxu0 0.0
    %1375 = vmatpush1.msra.mxu0 %v1042
    %1376 = vmatprep.subr.mxu0 0.0
    %1377 = vmatpush1.msra.mxu0 %v1043
    %1378 = vmatprep.subr.mxu0 0.0
    %1379 = vmatpush1.msra.mxu0 %v1044
    %1380 = vmatprep.subr.mxu0 0.0
    %1381 = vmatpush1.msra.mxu0 0.0
    %1382 = vmatprep.subr.mxu0 0.0
    %1383 = vmatpush1.msra.mxu0 0.0
    %1384 = vmatprep.subr.mxu0 0.0
    %1385 = vmatpush1.msra.mxu0 0.0
    %1386 = vmatprep.subr.mxu0 0.0
    %1387 = vmatpush1.msra.mxu0 0.0
    %1388 = vmatprep.subr.mxu0 0.0
    %1389 = vmatpush1.msra.mxu0 0.0
    %1390 = vmatprep.subr.mxu0 0.0
    %1391 = vmatpush1.msra.mxu0 0.0
    %1392 = vmatprep.subr.mxu0 0.0
    %1393 = vmatpush1.msra.mxu0 0.0
    %1394 = vmatprep.subr.mxu0 0.0
    %1395 = vmatpush1.msra.mxu0 0.0
    %1396 = vmatprep.subr.mxu0 0.0
    %1397 = vmatpush1.msra.mxu0 0.0
    %1398 = vmatprep.subr.mxu0 0.0
    %1399 = vmatpush1.msra.mxu0 0.0
    %1400 = vmatprep.subr.mxu0 0.0
    %1401 = vmatpush1.msra.mxu0 0.0
    %1402 = vmatprep.subr.mxu0 0.0
    %1403 = vmatpush1.msra.mxu0 0.0
    %1404 = vmatprep.subr.mxu0 0.0
    %1405 = vmatpush1.msra.mxu0 0.0
    %1406 = vmatprep.subr.mxu0 0.0
    %1407 = vmatpush1.msra.mxu0 0.0
    %1408 = vmatprep.subr.mxu0 0.0
    %1409 = vmatpush1.msra.mxu0 0.0
    %1410 = vmatprep.subr.mxu0 0.0
    %1411 = vmatpush1.msra.mxu0 0.0
    %1412 = vmatprep.subr.mxu0 0.0
    %1413 = vmatpush1.msra.mxu0 0.0
    %1414 = vmatprep.subr.mxu0 0.0
    %1415 = vmatpush1.msra.mxu0 0.0
    %1416 = vmatprep.subr.mxu0 0.0
    %1417 = vmatpush1.msra.mxu0 0.0
    %1418 = vmatprep.subr.mxu0 0.0
    %1419 = vmatpush1.msra.mxu0 0.0
    %1420 = vmatprep.subr.mxu0 0.0
    %1421 = vmatpush1.msra.mxu0 0.0
    %1422 = vmatprep.subr.mxu0 0.0
    %1423 = vmatpush1.msra.mxu0 0.0
    %1424 = vmatprep.subr.mxu0 0.0
    %1425 = vmatpush1.msra.mxu0 0.0
    %1426 = vmatprep.subr.mxu0 0.0
    %1427 = vmatpush1.msra.mxu0 0.0
    %1428 = vmatprep.subr.mxu0 0.0
    %1429 = vmatpush1.msra.mxu0 0.0
    %1430 = vmatprep.subr.mxu0 0.0
    %1431 = vmatpush1.msra.mxu0 0.0
    %1432 = vmatprep.subr.mxu0 0.0
    %1433 = vmatpush1.msra.mxu0 0.0
    %1434 = vmatprep.subr.mxu0 0.0
    %1435 = vmatpush1.msra.mxu0 0.0
    %1436 = vmatprep.mubr.f32.mxu0 0.0
    %1437 = vmatmul.mubr.f32.gmra.mrb[0].mxu0 %v1370
    %v1438 = vpop.f32.mrb[0].mxu0
    %v1439 = vadd.f32 0.0, %v1438
    %v1440 = vpop.f32.mrb[0].mxu0
    %1441 = vdwg.mxu0
    %v1442 = vadd.f32 %v1369, %v1439
    %v1443 = vxor.u32 %v1442, 2147483648
    %v1444 = vmul.f32 %v1443, 1.442695
    %v1445 = vpow.pop %v1444
    %v1446 = vadd.f32 %v1445, 1.0
    %v1447 = vrcp.pop %v1446
    %v1448 = vmul.f32 1.0, %v1447
    %v1449 = vadd.f32 %v1439, %v1129
    %1451 = vrot.lane.b32.xlu0 %v1449, 64
    %v1452 = vpop.permute.xlu0 %1451
    %v1454 = vmul.f32 %v1448, %v1452
    %1456 = vrot.lane.b32.xlu0 %v1454, 64
    %v1457 = vpop.permute.xlu0 %1456
    %v1459 = vadd.f32 %v1369, %v1457
    %v1460 = vtanh.pop %v1459
    %v1461 = vsub.f32 1.0, %v1448
    %1463 = vrot.lane.b32.xlu0 %v1460, 96
    %v1464 = vpop.permute.xlu0 %1463
    %v1466 = vmul.f32 %v1461, %v1464
    %v1467 = vmul.f32 %v1448, %v1363
    %v1468 = vadd.f32 %v1466, %v1467
    %1470 = vrot.lane.b32.xlu0 %v1468, 96
    %v1471 = vpop.permute.xlu0 %1470
    %1473 = vst.msk [vmem:[#allocation2 + $0x6] sm:$0x3] %vm208, %v1471
    %v1474 = vld [vmem:[#allocation3 + $0x8] sm:$0x3]
    %v1475 = vsel %vm97, %v1471, 0
    %1477 = vmatprep.subr.mxu0 0.0
    %1478 = vmatpush1.msra.mxu0 %v1041
    %1479 = vmatprep.subr.mxu0 0.0
    %1480 = vmatpush1.msra.mxu0 %v1042
    %1481 = vmatprep.subr.mxu0 0.0
    %1482 = vmatpush1.msra.mxu0 %v1043
    %1483 = vmatprep.subr.mxu0 0.0
    %1484 = vmatpush1.msra.mxu0 %v1044
    %1485 = vmatprep.subr.mxu0 0.0
    %1486 = vmatpush1.msra.mxu0 0.0
    %1487 = vmatprep.subr.mxu0 0.0
    %1488 = vmatpush1.msra.mxu0 0.0
    %1489 = vmatprep.subr.mxu0 0.0
    %1490 = vmatpush1.msra.mxu0 0.0
    %1491 = vmatprep.subr.mxu0 0.0
    %1492 = vmatpush1.msra.mxu0 0.0
    %1493 = vmatprep.subr.mxu0 0.0
    %1494 = vmatpush1.msra.mxu0 0.0
    %1495 = vmatprep.subr.mxu0 0.0
    %1496 = vmatpush1.msra.mxu0 0.0
    %1497 = vmatprep.subr.mxu0 0.0
    %1498 = vmatpush1.msra.mxu0 0.0
    %1499 = vmatprep.subr.mxu0 0.0
    %1500 = vmatpush1.msra.mxu0 0.0
    %1501 = vmatprep.subr.mxu0 0.0
    %1502 = vmatpush1.msra.mxu0 0.0
    %1503 = vmatprep.subr.mxu0 0.0
    %1504 = vmatpush1.msra.mxu0 0.0
    %1505 = vmatprep.subr.mxu0 0.0
    %1506 = vmatpush1.msra.mxu0 0.0
    %1507 = vmatprep.subr.mxu0 0.0
    %1508 = vmatpush1.msra.mxu0 0.0
    %1509 = vmatprep.subr.mxu0 0.0
    %1510 = vmatpush1.msra.mxu0 0.0
    %1511 = vmatprep.subr.mxu0 0.0
    %1512 = vmatpush1.msra.mxu0 0.0
    %1513 = vmatprep.subr.mxu0 0.0
    %1514 = vmatpush1.msra.mxu0 0.0
    %1515 = vmatprep.subr.mxu0 0.0
    %1516 = vmatpush1.msra.mxu0 0.0
    %1517 = vmatprep.subr.mxu0 0.0
    %1518 = vmatpush1.msra.mxu0 0.0
    %1519 = vmatprep.subr.mxu0 0.0
    %1520 = vmatpush1.msra.mxu0 0.0
    %1521 = vmatprep.subr.mxu0 0.0
    %1522 = vmatpush1.msra.mxu0 0.0
    %1523 = vmatprep.subr.mxu0 0.0
    %1524 = vmatpush1.msra.mxu0 0.0
    %1525 = vmatprep.subr.mxu0 0.0
    %1526 = vmatpush1.msra.mxu0 0.0
    %1527 = vmatprep.subr.mxu0 0.0
    %1528 = vmatpush1.msra.mxu0 0.0
    %1529 = vmatprep.subr.mxu0 0.0
    %1530 = vmatpush1.msra.mxu0 0.0
    %1531 = vmatprep.subr.mxu0 0.0
    %1532 = vmatpush1.msra.mxu0 0.0
    %1533 = vmatprep.subr.mxu0 0.0
    %1534 = vmatpush1.msra.mxu0 0.0
    %1535 = vmatprep.subr.mxu0 0.0
    %1536 = vmatpush1.msra.mxu0 0.0
    %1537 = vmatprep.subr.mxu0 0.0
    %1538 = vmatpush1.msra.mxu0 0.0
    %1539 = vmatprep.subr.mxu0 0.0
    %1540 = vmatpush1.msra.mxu0 0.0
    %1541 = vmatprep.mubr.f32.mxu0 0.0
    %1542 = vmatmul.mubr.f32.gmra.mrb[0].mxu0 %v1475
    %v1543 = vpop.f32.mrb[0].mxu0
    %v1544 = vadd.f32 0.0, %v1543
    %v1545 = vpop.f32.mrb[0].mxu0
    %1546 = vdwg.mxu0
    %v1547 = vadd.f32 %v1474, %v1544
    %v1548 = vxor.u32 %v1547, 2147483648
    %v1549 = vmul.f32 %v1548, 1.442695
    %v1550 = vpow.pop %v1549
    %v1551 = vadd.f32 %v1550, 1.0
    %v1552 = vrcp.pop %v1551
    %v1553 = vmul.f32 1.0, %v1552
    %v1554 = vadd.f32 %v1544, %v1129
    %1556 = vrot.lane.b32.xlu0 %v1554, 64
    %v1557 = vpop.permute.xlu0 %1556
    %v1559 = vmul.f32 %v1553, %v1557
    %1561 = vrot.lane.b32.xlu0 %v1559, 64
    %v1562 = vpop.permute.xlu0 %1561
    %v1564 = vadd.f32 %v1474, %v1562
    %v1565 = vtanh.pop %v1564
    %v1566 = vsub.f32 1.0, %v1553
    %1568 = vrot.lane.b32.xlu0 %v1565, 96
    %v1569 = vpop.permute.xlu0 %1568
    %v1571 = vmul.f32 %v1566, %v1569
    %v1572 = vmul.f32 %v1553, %v1468
    %v1573 = vadd.f32 %v1571, %v1572
    %1575 = vrot.lane.b32.xlu0 %v1573, 96
    %v1576 = vpop.permute.xlu0 %1575
    %1578 = vst.msk [vmem:[#allocation2 + $0x8] sm:$0x3] %vm208, %v1576
    %v1579 = vld [vmem:[#allocation3 + $0xa] sm:$0x3]
    %v1580 = vsel %vm97, %v1576, 0
    %1582 = vmatprep.subr.mxu0 0.0
    %1583 = vmatpush1.msra.mxu0 %v1041
    %1584 = vmatprep.subr.mxu0 0.0
    %1585 = vmatpush1.msra.mxu0 %v1042
    %1586 = vmatprep.subr.mxu0 0.0
    %1587 = vmatpush1.msra.mxu0 %v1043
    %1588 = vmatprep.subr.mxu0 0.0
    %1589 = vmatpush1.msra.mxu0 %v1044
    %1590 = vmatprep.subr.mxu0 0.0
    %1591 = vmatpush1.msra.mxu0 0.0
    %1592 = vmatprep.subr.mxu0 0.0
    %1593 = vmatpush1.msra.mxu0 0.0
    %1594 = vmatprep.subr.mxu0 0.0
    %1595 = vmatpush1.msra.mxu0 0.0
    %1596 = vmatprep.subr.mxu0 0.0
    %1597 = vmatpush1.msra.mxu0 0.0
    %1598 = vmatprep.subr.mxu0 0.0
    %1599 = vmatpush1.msra.mxu0 0.0
    %1600 = vmatprep.subr.mxu0 0.0
    %1601 = vmatpush1.msra.mxu0 0.0
    %1602 = vmatprep.subr.mxu0 0.0
    %1603 = vmatpush1.msra.mxu0 0.0
    %1604 = vmatprep.subr.mxu0 0.0
    %1605 = vmatpush1.msra.mxu0 0.0
    %1606 = vmatprep.subr.mxu0 0.0
    %1607 = vmatpush1.msra.mxu0 0.0
    %1608 = vmatprep.subr.mxu0 0.0
    %1609 = vmatpush1.msra.mxu0 0.0
    %1610 = vmatprep.subr.mxu0 0.0
    %1611 = vmatpush1.msra.mxu0 0.0
    %1612 = vmatprep.subr.mxu0 0.0
    %1613 = vmatpush1.msra.mxu0 0.0
    %1614 = vmatprep.subr.mxu0 0.0
    %1615 = vmatpush1.msra.mxu0 0.0
    %1616 = vmatprep.subr.mxu0 0.0
    %1617 = vmatpush1.msra.mxu0 0.0
    %1618 = vmatprep.subr.mxu0 0.0
    %1619 = vmatpush1.msra.mxu0 0.0
    %1620 = vmatprep.subr.mxu0 0.0
    %1621 = vmatpush1.msra.mxu0 0.0
    %1622 = vmatprep.subr.mxu0 0.0
    %1623 = vmatpush1.msra.mxu0 0.0
    %1624 = vmatprep.subr.mxu0 0.0
    %1625 = vmatpush1.msra.mxu0 0.0
    %1626 = vmatprep.subr.mxu0 0.0
    %1627 = vmatpush1.msra.mxu0 0.0
    %1628 = vmatprep.subr.mxu0 0.0
    %1629 = vmatpush1.msra.mxu0 0.0
    %1630 = vmatprep.subr.mxu0 0.0
    %1631 = vmatpush1.msra.mxu0 0.0
    %1632 = vmatprep.subr.mxu0 0.0
    %1633 = vmatpush1.msra.mxu0 0.0
    %1634 = vmatprep.subr.mxu0 0.0
    %1635 = vmatpush1.msra.mxu0 0.0
    %1636 = vmatprep.subr.mxu0 0.0
    %1637 = vmatpush1.msra.mxu0 0.0
    %1638 = vmatprep.subr.mxu0 0.0
    %1639 = vmatpush1.msra.mxu0 0.0
    %1640 = vmatprep.subr.mxu0 0.0
    %1641 = vmatpush1.msra.mxu0 0.0
    %1642 = vmatprep.subr.mxu0 0.0
    %1643 = vmatpush1.msra.mxu0 0.0
    %1644 = vmatprep.subr.mxu0 0.0
    %1645 = vmatpush1.msra.mxu0 0.0
    %1646 = vmatprep.mubr.f32.mxu0 0.0
    %1647 = vmatmul.mubr.f32.gmra.mrb[0].mxu0 %v1580
    %v1648 = vpop.f32.mrb[0].mxu0
    %v1649 = vadd.f32 0.0, %v1648
    %v1650 = vpop.f32.mrb[0].mxu0
    %1651 = vdwg.mxu0
    %v1652 = vadd.f32 %v1579, %v1649
    %v1653 = vxor.u32 %v1652, 2147483648
    %v1654 = vmul.f32 %v1653, 1.442695
    %v1655 = vpow.pop %v1654
    %v1656 = vadd.f32 %v1655, 1.0
    %v1657 = vrcp.pop %v1656
    %v1658 = vmul.f32 1.0, %v1657
    %v1659 = vadd.f32 %v1649, %v1129
    %1661 = vrot.lane.b32.xlu0 %v1659, 64
    %v1662 = vpop.permute.xlu0 %1661
    %v1664 = vmul.f32 %v1658, %v1662
    %1666 = vrot.lane.b32.xlu0 %v1664, 64
    %v1667 = vpop.permute.xlu0 %1666
    %v1669 = vadd.f32 %v1579, %v1667
    %v1670 = vtanh.pop %v1669
    %v1671 = vsub.f32 1.0, %v1658
    %1673 = vrot.lane.b32.xlu0 %v1670, 96
    %v1674 = vpop.permute.xlu0 %1673
    %v1676 = vmul.f32 %v1671, %v1674
    %v1677 = vmul.f32 %v1658, %v1573
    %v1678 = vadd.f32 %v1676, %v1677
    %1680 = vrot.lane.b32.xlu0 %v1678, 96
    %v1681 = vpop.permute.xlu0 %1680
    %1683 = vst.msk [vmem:[#allocation2 + $0xa] sm:$0x3] %vm208, %v1681
    %v1684 = vld [vmem:[#allocation3 + $0xc] sm:$0x3]
    %v1685 = vsel %vm97, %v1681, 0
    %1687 = vmatprep.subr.mxu0 0.0
    %1688 = vmatpush1.msra.mxu0 %v1041
    %1689 = vmatprep.subr.mxu0 0.0
    %1690 = vmatpush1.msra.mxu0 %v1042
    %1691 = vmatprep.subr.mxu0 0.0
    %1692 = vmatpush1.msra.mxu0 %v1043
    %1693 = vmatprep.subr.mxu0 0.0
    %1694 = vmatpush1.msra.mxu0 %v1044
    %1695 = vmatprep.subr.mxu0 0.0
    %1696 = vmatpush1.msra.mxu0 0.0
    %1697 = vmatprep.subr.mxu0 0.0
    %1698 = vmatpush1.msra.mxu0 0.0
    %1699 = vmatprep.subr.mxu0 0.0
    %1700 = vmatpush1.msra.mxu0 0.0
    %1701 = vmatprep.subr.mxu0 0.0
    %1702 = vmatpush1.msra.mxu0 0.0
    %1703 = vmatprep.subr.mxu0 0.0
    %1704 = vmatpush1.msra.mxu0 0.0
    %1705 = vmatprep.subr.mxu0 0.0
    %1706 = vmatpush1.msra.mxu0 0.0
    %1707 = vmatprep.subr.mxu0 0.0
    %1708 = vmatpush1.msra.mxu0 0.0
    %1709 = vmatprep.subr.mxu0 0.0
    %1710 = vmatpush1.msra.mxu0 0.0
    %1711 = vmatprep.subr.mxu0 0.0
    %1712 = vmatpush1.msra.mxu0 0.0
    %1713 = vmatprep.subr.mxu0 0.0
    %1714 = vmatpush1.msra.mxu0 0.0
    %1715 = vmatprep.subr.mxu0 0.0
    %1716 = vmatpush1.msra.mxu0 0.0
    %1717 = vmatprep.subr.mxu0 0.0
    %1718 = vmatpush1.msra.mxu0 0.0
    %1719 = vmatprep.subr.mxu0 0.0
    %1720 = vmatpush1.msra.mxu0 0.0
    %1721 = vmatprep.subr.mxu0 0.0
    %1722 = vmatpush1.msra.mxu0 0.0
    %1723 = vmatprep.subr.mxu0 0.0
    %1724 = vmatpush1.msra.mxu0 0.0
    %1725 = vmatprep.subr.mxu0 0.0
    %1726 = vmatpush1.msra.mxu0 0.0
    %1727 = vmatprep.subr.mxu0 0.0
    %1728 = vmatpush1.msra.mxu0 0.0
    %1729 = vmatprep.subr.mxu0 0.0
    %1730 = vmatpush1.msra.mxu0 0.0
    %1731 = vmatprep.subr.mxu0 0.0
    %1732 = vmatpush1.msra.mxu0 0.0
    %1733 = vmatprep.subr.mxu0 0.0
    %1734 = vmatpush1.msra.mxu0 0.0
    %1735 = vmatprep.subr.mxu0 0.0
    %1736 = vmatpush1.msra.mxu0 0.0
    %1737 = vmatprep.subr.mxu0 0.0
    %1738 = vmatpush1.msra.mxu0 0.0
    %1739 = vmatprep.subr.mxu0 0.0
    %1740 = vmatpush1.msra.mxu0 0.0
    %1741 = vmatprep.subr.mxu0 0.0
    %1742 = vmatpush1.msra.mxu0 0.0
    %1743 = vmatprep.subr.mxu0 0.0
    %1744 = vmatpush1.msra.mxu0 0.0
    %1745 = vmatprep.subr.mxu0 0.0
    %1746 = vmatpush1.msra.mxu0 0.0
    %1747 = vmatprep.subr.mxu0 0.0
    %1748 = vmatpush1.msra.mxu0 0.0
    %1749 = vmatprep.subr.mxu0 0.0
    %1750 = vmatpush1.msra.mxu0 0.0
    %1751 = vmatprep.mubr.f32.mxu0 0.0
    %1752 = vmatmul.mubr.f32.gmra.mrb[0].mxu0 %v1685
    %v1753 = vpop.f32.mrb[0].mxu0
    %v1754 = vadd.f32 0.0, %v1753
    %v1755 = vpop.f32.mrb[0].mxu0
    %1756 = vdwg.mxu0
    %v1757 = vadd.f32 %v1684, %v1754
    %v1758 = vxor.u32 %v1757, 2147483648
    %v1759 = vmul.f32 %v1758, 1.442695
    %v1760 = vpow.pop %v1759
    %v1761 = vadd.f32 %v1760, 1.0
    %v1762 = vrcp.pop %v1761
    %v1763 = vmul.f32 1.0, %v1762
    %v1764 = vadd.f32 %v1754, %v1129
    %1766 = vrot.lane.b32.xlu0 %v1764, 64
    %v1767 = vpop.permute.xlu0 %1766
    %v1769 = vmul.f32 %v1763, %v1767
    %1771 = vrot.lane.b32.xlu0 %v1769, 64
    %v1772 = vpop.permute.xlu0 %1771
    %v1774 = vadd.f32 %v1684, %v1772
    %v1775 = vtanh.pop %v1774
    %v1776 = vsub.f32 1.0, %v1763
    %1778 = vrot.lane.b32.xlu0 %v1775, 96
    %v1779 = vpop.permute.xlu0 %1778
    %v1781 = vmul.f32 %v1776, %v1779
    %v1782 = vmul.f32 %v1763, %v1678
    %v1783 = vadd.f32 %v1781, %v1782
    %1785 = vrot.lane.b32.xlu0 %v1783, 96
    %v1786 = vpop.permute.xlu0 %1785
    %1788 = vst.msk [vmem:[#allocation2 + $0xc] sm:$0x3] %vm208, %v1786
    %v1789 = vld [vmem:[#allocation3 + $0xe] sm:$0x3]
    %v1790 = vsel %vm97, %v1786, 0
    %1792 = vmatprep.subr.mxu0 0.0
    %1793 = vmatpush1.msra.mxu0 %v1041
    %1794 = vmatprep.subr.mxu0 0.0
    %1795 = vmatpush1.msra.mxu0 %v1042
    %1796 = vmatprep.subr.mxu0 0.0
    %1797 = vmatpush1.msra.mxu0 %v1043
    %1798 = vmatprep.subr.mxu0 0.0
    %1799 = vmatpush1.msra.mxu0 %v1044
    %1800 = vmatprep.subr.mxu0 0.0
    %1801 = vmatpush1.msra.mxu0 0.0
    %1802 = vmatprep.subr.mxu0 0.0
    %1803 = vmatpush1.msra.mxu0 0.0
    %1804 = vmatprep.subr.mxu0 0.0
    %1805 = vmatpush1.msra.mxu0 0.0
    %1806 = vmatprep.subr.mxu0 0.0
    %1807 = vmatpush1.msra.mxu0 0.0
    %1808 = vmatprep.subr.mxu0 0.0
    %1809 = vmatpush1.msra.mxu0 0.0
    %1810 = vmatprep.subr.mxu0 0.0
    %1811 = vmatpush1.msra.mxu0 0.0
    %1812 = vmatprep.subr.mxu0 0.0
    %1813 = vmatpush1.msra.mxu0 0.0
    %1814 = vmatprep.subr.mxu0 0.0
    %1815 = vmatpush1.msra.mxu0 0.0
    %1816 = vmatprep.subr.mxu0 0.0
    %1817 = vmatpush1.msra.mxu0 0.0
    %1818 = vmatprep.subr.mxu0 0.0
    %1819 = vmatpush1.msra.mxu0 0.0
    %1820 = vmatprep.subr.mxu0 0.0
    %1821 = vmatpush1.msra.mxu0 0.0
    %1822 = vmatprep.subr.mxu0 0.0
    %1823 = vmatpush1.msra.mxu0 0.0
    %1824 = vmatprep.subr.mxu0 0.0
    %1825 = vmatpush1.msra.mxu0 0.0
    %1826 = vmatprep.subr.mxu0 0.0
    %1827 = vmatpush1.msra.mxu0 0.0
    %1828 = vmatprep.subr.mxu0 0.0
    %1829 = vmatpush1.msra.mxu0 0.0
    %1830 = vmatprep.subr.mxu0 0.0
    %1831 = vmatpush1.msra.mxu0 0.0
    %1832 = vmatprep.subr.mxu0 0.0
    %1833 = vmatpush1.msra.mxu0 0.0
    %1834 = vmatprep.subr.mxu0 0.0
    %1835 = vmatpush1.msra.mxu0 0.0
    %1836 = vmatprep.subr.mxu0 0.0
    %1837 = vmatpush1.msra.mxu0 0.0
    %1838 = vmatprep.subr.mxu0 0.0
    %1839 = vmatpush1.msra.mxu0 0.0
    %1840 = vmatprep.subr.mxu0 0.0
    %1841 = vmatpush1.msra.mxu0 0.0
    %1842 = vmatprep.subr.mxu0 0.0
    %1843 = vmatpush1.msra.mxu0 0.0
    %1844 = vmatprep.subr.mxu0 0.0
    %1845 = vmatpush1.msra.mxu0 0.0
    %1846 = vmatprep.subr.mxu0 0.0
    %1847 = vmatpush1.msra.mxu0 0.0
    %1848 = vmatprep.subr.mxu0 0.0
    %1849 = vmatpush1.msra.mxu0 0.0
    %1850 = vmatprep.subr.mxu0 0.0
    %1851 = vmatpush1.msra.mxu0 0.0
    %1852 = vmatprep.subr.mxu0 0.0
    %1853 = vmatpush1.msra.mxu0 0.0
    %1854 = vmatprep.subr.mxu0 0.0
    %1855 = vmatpush1.msra.mxu0 0.0
    %1856 = vmatprep.mubr.f32.mxu0 0.0
    %1857 = vmatmul.mubr.f32.gmra.mrb[0].mxu0 %v1790
    %v1858 = vpop.f32.mrb[0].mxu0
    %v1859 = vadd.f32 0.0, %v1858
    %v1860 = vpop.f32.mrb[0].mxu0
    %1861 = vdwg.mxu0
    %v1862 = vadd.f32 %v1789, %v1859
    %v1863 = vxor.u32 %v1862, 2147483648
    %v1864 = vmul.f32 %v1863, 1.442695
    %v1865 = vpow.pop %v1864
    %v1866 = vadd.f32 %v1865, 1.0
    %v1867 = vrcp.pop %v1866
    %v1868 = vmul.f32 1.0, %v1867
    %v1869 = vadd.f32 %v1859, %v1129
    %1871 = vrot.lane.b32.xlu0 %v1869, 64
    %v1872 = vpop.permute.xlu0 %1871
    %v1874 = vmul.f32 %v1868, %v1872
    %1876 = vrot.lane.b32.xlu0 %v1874, 64
    %v1877 = vpop.permute.xlu0 %1876
    %v1879 = vadd.f32 %v1789, %v1877
    %v1880 = vtanh.pop %v1879
    %v1881 = vsub.f32 1.0, %v1868
    %1883 = vrot.lane.b32.xlu0 %v1880, 96
    %v1884 = vpop.permute.xlu0 %1883
    %v1886 = vmul.f32 %v1881, %v1884
    %v1887 = vmul.f32 %v1868, %v1783
    %v1888 = vadd.f32 %v1886, %v1887
    %1890 = vrot.lane.b32.xlu0 %v1888, 96
    %v1891 = vpop.permute.xlu0 %1890
    %1893 = vst.msk [vmem:[#allocation2 + $0xe] sm:$0x3] %vm208, %v1891
    %v1894 = vld [vmem:[#allocation2] sm:$0xff]
    %v1895 = vld [vmem:[#allocation2 + $0x8] sm:$0xff]
    %v1896 = vld [vmem:[%s6] sm:$0xff]
    %v1897 = vld [vmem:[%s6 + $0x8] sm:$0xff]
    %v1898 = vld [vmem:[%s6 + $0x10] sm:$0xff]
    %v1899 = vld [vmem:[%s6 + $0x18] sm:$0xff]
    %v1900 = vld [vmem:[%s7] sm:$0x1]
    %v1902 = vlaneseq
    %v1903 = vshrl.u32 %v1902, 7
    %v1904 = vsub.s32 0, %v1903
    %v1905 = vrot.slane %v1900, %v1904
    %v1908 = vsel %vm97, %v1894, 0
    %v1911 = vsel %vm97, %v1895, 0
    %1913 = vmatprep.subr.mxu0 0.0
    %1914 = vmatpush1.msra.mxu0 %v1896
    %1915 = vmatprep.subr.mxu0 0.0
    %1916 = vmatpush1.msra.mxu0 %v1897
    %1917 = vmatprep.subr.mxu0 0.0
    %1918 = vmatpush1.msra.mxu0 %v1898
    %1919 = vmatprep.subr.mxu0 0.0
    %1920 = vmatpush1.msra.mxu0 %v1899
    %1921 = vmatprep.subr.mxu0 0.0
    %1922 = vmatpush1.msra.mxu0 0.0
    %1923 = vmatprep.subr.mxu0 0.0
    %1924 = vmatpush1.msra.mxu0 0.0
    %1925 = vmatprep.subr.mxu0 0.0
    %1926 = vmatpush1.msra.mxu0 0.0
    %1927 = vmatprep.subr.mxu0 0.0
    %1928 = vmatpush1.msra.mxu0 0.0
    %1929 = vmatprep.subr.mxu0 0.0
    %1930 = vmatpush1.msra.mxu0 0.0
    %1931 = vmatprep.subr.mxu0 0.0
    %1932 = vmatpush1.msra.mxu0 0.0
    %1933 = vmatprep.subr.mxu0 0.0
    %1934 = vmatpush1.msra.mxu0 0.0
    %1935 = vmatprep.subr.mxu0 0.0
    %1936 = vmatpush1.msra.mxu0 0.0
    %1937 = vmatprep.subr.mxu0 0.0
    %1938 = vmatpush1.msra.mxu0 0.0
    %1939 = vmatprep.subr.mxu0 0.0
    %1940 = vmatpush1.msra.mxu0 0.0
    %1941 = vmatprep.subr.mxu0 0.0
    %1942 = vmatpush1.msra.mxu0 0.0
    %1943 = vmatprep.subr.mxu0 0.0
    %1944 = vmatpush1.msra.mxu0 0.0
    %1945 = vmatprep.subr.mxu0 0.0
    %1946 = vmatpush1.msra.mxu0 0.0
    %1947 = vmatprep.subr.mxu0 0.0
    %1948 = vmatpush1.msra.mxu0 0.0
    %1949 = vmatprep.subr.mxu0 0.0
    %1950 = vmatpush1.msra.mxu0 0.0
    %1951 = vmatprep.subr.mxu0 0.0
    %1952 = vmatpush1.msra.mxu0 0.0
    %1953 = vmatprep.subr.mxu0 0.0
    %1954 = vmatpush1.msra.mxu0 0.0
    %1955 = vmatprep.subr.mxu0 0.0
    %1956 = vmatpush1.msra.mxu0 0.0
    %1957 = vmatprep.subr.mxu0 0.0
    %1958 = vmatpush1.msra.mxu0 0.0
    %1959 = vmatprep.subr.mxu0 0.0
    %1960 = vmatpush1.msra.mxu0 0.0
    %1961 = vmatprep.subr.mxu0 0.0
    %1962 = vmatpush1.msra.mxu0 0.0
    %1963 = vmatprep.subr.mxu0 0.0
    %1964 = vmatpush1.msra.mxu0 0.0
    %1965 = vmatprep.subr.mxu0 0.0
    %1966 = vmatpush1.msra.mxu0 0.0
    %1967 = vmatprep.subr.mxu0 0.0
    %1968 = vmatpush1.msra.mxu0 0.0
    %1969 = vmatprep.subr.mxu0 0.0
    %1970 = vmatpush1.msra.mxu0 0.0
    %1971 = vmatprep.subr.mxu0 0.0
    %1972 = vmatpush1.msra.mxu0 0.0
    %1973 = vmatprep.subr.mxu0 0.0
    %1974 = vmatpush1.msra.mxu0 0.0
    %1975 = vmatprep.subr.mxu0 0.0
    %1976 = vmatpush1.msra.mxu0 0.0
    %1977 = vmatprep.mubr.f32.mxu0 0.0
    %1978 = vmatmul.mubr.f32.gmra.mrb[0].mxu0 %v1908
    %v1979 = vpop.f32.mrb[0].mxu0
    %v1980 = vadd.f32 %v1905, %v1979
    %v1981 = vpop.f32.mrb[0].mxu0
    %1982 = vmatprep.mubr.f32.mxu0 0.0
    %1983 = vmatmul.mubr.f32.gmra.mrb[0].mxu0 %v1911
    %v1984 = vpop.f32.mrb[0].mxu0
    %v1985 = vadd.f32 %v1905, %v1984
    %v1986 = vpop.f32.mrb[0].mxu0
    %1987 = vdwg.mxu0
    %vm1988 = vcmask 64512
    %1989 = vst.msk [vmem:[%s8] sm:$0xff] %vm1988, %v1980
    %1990 = vst.msk [vmem:[%s8 + $0x8] sm:$0xff] %vm1988, %v1985
    // Predicated region
    $region42: #{tpu_custom_call.1} parent=1 // pred_check
      _
    $region43: #{tpu_custom_call.1} parent=1 // pred_check_branch
      %1992 = sbr.rel (0) target = $region45
    $region44: #{tpu_custom_call.1} parent=1 // pred_region
      _
    $region45: #{tpu_custom_call.1} parent=1 // pred_fallthru
      _
    // Predicated region
    $region46: #{tpu_custom_call.1} parent=1 // pred_check
      _
    $region47: #{tpu_custom_call.1} parent=1 // pred_check_branch
      %1994 = sbr.rel (0) target = $region49
    $region48: #{tpu_custom_call.1} parent=1 // pred_region
      _
    $region49: #{tpu_custom_call.1} parent=1 // pred_fallthru
      _
    %1995 = vsyncpa [#allocation5], 1
    %1996 = vsyncpa [#allocation7], 1

</llo_original>
